<compile_context>
chip_gen: v7x
topology: tpu7x:2x2x1
jax: 0.10.0
libtpu: 0.0.40
codegen_flags: <defaults>
</compile_context>

<pallas_src>
import jax
import jax.numpy as jnp
from jax.experimental import pallas as pl
from jax.experimental.pallas import tpu as pltpu

EPS = 1e-5
_VMEM_LIMIT = 48 * 1024 * 1024       # v7x-first budget (64 MiB physical)
_TARGET_BLOCK_BYTES = 1 << 20        # ~1 MiB f32 activation block per grid step


# ---------------------------------------------------------------------------
# Kernels
# ---------------------------------------------------------------------------
def _make_conv_stats_kernel(RB, H, L, pre_affine):
    """SAME 3x3 conv over a (RB, L) row slab + partial BN statistics.

    Rows are (image-group, h) pairs with RB % H == 0; L = G*W*C packs G images on
    the lane axis.  The three kh taps are matmuls against block-banded (L, L)
    weights; the h-1 / h+1 operands come from circular sublane rolls with zeros
    masked in at image boundaries (SAME padding + interior seams).  If
    `pre_affine`, the previous layer's folded BatchNorm (scale/shift FMA) + ReLU is
    applied to the tile first.  Outputs: conv result (RB, L) and partial stats
    (2, L) = [sum_rows(y); sum_rows(y*y)]; the wrapper finishes the reduction.
    """

    def conv_body(x_f32, w_ref, y_ref, st_ref):
        # h position of every row within its image (static iota; no data dep).
        h = jax.lax.broadcasted_iota(jnp.int32, (RB, 1), 0) % H
        # x[h-1] / x[h+1] via XLU sublane rotation; rows crossing an image
        # boundary are the SAME-padding zeros.  Roll/select in f32 (v5e-safe VPU),
        # cast to bf16 only for the MXU operands.
        x_up = jnp.where(h == 0, 0.0,
                         pltpu.roll(x_f32, shift=1, axis=0)).astype(jnp.bfloat16)
        x_dn = jnp.where(h == H - 1, 0.0,
                         pltpu.roll(x_f32, shift=RB - 1, axis=0)).astype(jnp.bfloat16)
        xb = x_f32.astype(jnp.bfloat16)

        y = jnp.dot(xb, w_ref[1], preferred_element_type=jnp.float32)
        y = y + jnp.dot(x_up, w_ref[0], preferred_element_type=jnp.float32)
        y = y + jnp.dot(x_dn, w_ref[2], preferred_element_type=jnp.float32)

        y_ref[...] = y.astype(y_ref.dtype)
        st_ref[...] = jnp.concatenate(
            [jnp.sum(y, axis=0, keepdims=True),
             jnp.sum(y * y, axis=0, keepdims=True)], axis=0)

    if pre_affine:
        def kernel(x_ref, w_ref, scale_ref, shift_ref, y_ref, st_ref):
            x = jnp.maximum(
                x_ref[...].astype(jnp.float32) * scale_ref[...] + shift_ref[...],
                0.0)
            conv_body(x, w_ref, y_ref, st_ref)
    else:
        def kernel(x_ref, w_ref, y_ref, st_ref):
            conv_body(x_ref[...].astype(jnp.float32), w_ref, y_ref, st_ref)

    return kernel


def _final_kernel(y_ref, x_ref, scale_ref, shift_ref, o_ref):
    """Fused BN2 (single FMA) + residual add + ReLU."""
    o_ref[...] = jnp.maximum(
        y_ref[...] * scale_ref[...] + shift_ref[...] + x_ref[...], 0.0)


# ---------------------------------------------------------------------------
# pallas_call wrappers
# ---------------------------------------------------------------------------
def _conv_stats(x2d, banded, out_dtype, rows_per_block, H, scale=None, shift=None):
    R, L = x2d.shape
    steps = R // rows_per_block
    pre = scale is not None
    kernel = _make_conv_stats_kernel(rows_per_block, H, L, pre)

    in_specs = [
        pl.BlockSpec((rows_per_block, L), lambda n: (n, 0)),   # activation slab
        pl.BlockSpec((3, L, L), lambda n: (0, 0, 0)),          # banded weights
    ]
    args = [x2d, banded]
    if pre:
        in_specs += [pl.BlockSpec((1, L), lambda n: (0, 0)),
                     pl.BlockSpec((1, L), lambda n: (0, 0))]
        args += [scale, shift]

    y, st = pl.pallas_call(
        kernel,
        grid=(steps,),
        in_specs=in_specs,
        out_specs=(pl.BlockSpec((rows_per_block, L), lambda n: (n, 0)),
                   pl.BlockSpec((None, 2, L), lambda n: (n, 0, 0))),
        out_shape=(jax.ShapeDtypeStruct((R, L), out_dtype),
                   jax.ShapeDtypeStruct((steps, 2, L), jnp.float32)),
        compiler_params=pltpu.CompilerParams(
            dimension_semantics=("parallel",),
            vmem_limit_bytes=_VMEM_LIMIT),
    )(*args)
    return y, st


def _bn_residual_relu(y2d, x2d, scale, shift, rows_per_block):
    R, L = y2d.shape
    steps = R // rows_per_block
    return pl.pallas_call(
        _final_kernel,
        grid=(steps,),
        in_specs=[pl.BlockSpec((rows_per_block, L), lambda n: (n, 0)),
                  pl.BlockSpec((rows_per_block, L), lambda n: (n, 0)),
                  pl.BlockSpec((1, L), lambda n: (0, 0)),
                  pl.BlockSpec((1, L), lambda n: (0, 0))],
        out_specs=pl.BlockSpec((rows_per_block, L), lambda n: (n, 0)),
        out_shape=jax.ShapeDtypeStruct((R, L), jnp.float32),
        input_output_aliases={1: 0},   # reuse the residual's buffer for the output
        compiler_params=pltpu.CompilerParams(
            dimension_semantics=("parallel",),
            vmem_limit_bytes=_VMEM_LIMIT),
    )(y2d, x2d, scale, shift)


# ---------------------------------------------------------------------------
# Weight / BN parameter preparation (wrapper-side, tiny)
# ---------------------------------------------------------------------------
def deconv_weight_to_hwio(w_t):
    """ConvTranspose2d weight (Cin, Cout, 3, 3) -> equivalent SAME-conv HWIO weight."""
    return jnp.transpose(w_t[:, :, ::-1, ::-1], (2, 3, 0, 1))  # (3, 3, Cin, Cout)


def _build_banded(w_hwio, W, G):
    """HWIO 3x3 kernel -> per-kh block-banded (L, L) matmul weights, L = G*W*C.

    Within one image: B_kh[w_in*C+ci, w_out*C+co] = w[kh, w_in-w_out+1, ci, co]
    (zero outside the band), folding the kw taps and the W-direction SAME padding
    into the matmul.  kron(I_G, .) makes it block-diagonal over the G images packed
    on the lane axis.
    """
    eye_g = jnp.eye(G, dtype=w_hwio.dtype)
    rows = []
    for kh in range(3):
        b = sum(jnp.kron(jnp.eye(W, W, 1 - kw, dtype=w_hwio.dtype), w_hwio[kh, kw])
                for kw in range(3))
        rows.append(jnp.kron(eye_g, b))
    return jnp.stack(rows)  # (3, L, L)


def _bn_scale_shift(stats, gamma, beta, count):
    """Finish the cross-block BN reduction and fold BN into one scale/shift FMA."""
    C = gamma.shape[0]
    L = stats.shape[-1]
    s = stats.reshape(-1, 2, L // C, C).sum(axis=(0, 2))      # (2, C)
    mean = s[0] / count
    var = s[1] / count - mean * mean                          # biased (training) var
    scale = gamma * jax.lax.rsqrt(var + EPS)
    shift = beta - mean * scale
    reps = L // C
    return (jnp.tile(scale, reps).reshape(1, L).astype(jnp.float32),
            jnp.tile(shift, reps).reshape(1, L).astype(jnp.float32))


# ---------------------------------------------------------------------------
# Layout / tiling heuristics
# ---------------------------------------------------------------------------
def _pack_factor(wc, n):
    """How many images to pack side by side on the lane axis for 128-lane density."""
    if wc < 128 and 128 % wc == 0 and n % (128 // wc) == 0:
        return 128 // wc
    return 1


def _rows_per_block(num_groups, H, L):
    """Whole image-groups per block; ~<=1 MiB f32 per activation block and, when the
    data is big enough, >= 8 grid steps so the pipeline / both v7x cores get work."""
    max_k = max(1, _TARGET_BLOCK_BYTES // (H * L * 4))
    divisors = [k for k in range(1, num_groups + 1)
                if num_groups % k == 0 and k <= max_k]
    if not divisors:
        divisors = [1]
    pipelined = [k for k in divisors if num_groups // k >= 8]
    return (max(pipelined) if pipelined else max(divisors)) * H


# ---------------------------------------------------------------------------
# Block forward
# ---------------------------------------------------------------------------
def deblock_forward(x_nchw, params):
    w1, g1, b1, w2, g2, b2 = params      # w*: (3,3,C,C) HWIO; g*/b*: (C,)
    N, C, H, W = x_nchw.shape
    wc = W * C
    G = _pack_factor(wc, N)              # images packed along lanes
    NG = N // G
    L = G * wc                           # lane width (multiple of 128 when possible)

    # NCHW -> (NG*H, L): lane axis packs (image-in-group, w, c), channels fastest.
    x = jnp.transpose(x_nchw, (0, 2, 3, 1)).astype(jnp.float32)          # NHWC
    x = x.reshape(NG, G, H, W, C).transpose(0, 2, 1, 3, 4).reshape(NG * H, L)

    banded1 = _build_banded(w1, W, G).astype(jnp.bfloat16)
    banded2 = _build_banded(w2, W, G).astype(jnp.bfloat16)

    rb = _rows_per_block(NG, H, L)
    count = N * H * W

    # conv1 + partial stats, then fold BN1 into scale/shift.
    y1, st1 = _conv_stats(x, banded1, jnp.bfloat16, rb, H)
    sc1, sh1 = _bn_scale_shift(st1, g1, b1, count)
    # fused bn1 + relu (pre-op) -> conv2 + partial stats, then fold BN2.
    y2, st2 = _conv_stats(y1, banded2, jnp.float32, rb, H, sc1, sh1)
    sc2, sh2 = _bn_scale_shift(st2, g2, b2, count)
    # fused bn2 + residual add + relu (output aliases the residual buffer).
    out = _bn_residual_relu(y2, x, sc2, sh2, rb)

    # back to NCHW
    out = out.reshape(NG, H, G, W, C).transpose(0, 2, 1, 3, 4).reshape(N, H, W, C)
    return jnp.transpose(out, (0, 3, 1, 2))


# ---------------------------------------------------------------------------
# Pure-JAX f32 reference (independent conv path) for validation
# ---------------------------------------------------------------------------
def reference_forward(x_nchw, params):
    w1, g1, b1, w2, g2, b2 = params
    x = jnp.transpose(x_nchw, (0, 2, 3, 1)).astype(jnp.float32)
    dn = jax.lax.conv_dimension_numbers(x.shape, w1.shape, ('NHWC', 'HWIO', 'NHWC'))

    def conv(a, w):
        return jax.lax.conv_general_dilated(a, w, (1, 1), 'SAME', dimension_numbers=dn)

    def bn(a, g, b):
        m = jnp.mean(a, axis=(0, 1, 2), keepdims=True)
        v = jnp.mean((a - m) ** 2, axis=(0, 1, 2), keepdims=True)
        return (a - m) * jax.lax.rsqrt(v + EPS) * g.reshape(1, 1, 1, -1) + b.reshape(1, 1, 1, -1)

    out = jax.nn.relu(bn(conv(x, w1), g1, b1))
    out = jax.nn.relu(bn(conv(out, w2), g2, b2) + x)
    return jnp.transpose(out, (0, 3, 1, 2))


def init_params(key, inplanes, planes):
    k1, k2, k3, k4, k5, k6 = jax.random.split(key, 6)
    # ConvTranspose2d weights: (in_channels, out_channels, kH, kW)
    wt1 = 0.1 * jax.random.normal(k1, (inplanes, planes, 3, 3), jnp.float32)
    wt2 = 0.1 * jax.random.normal(k2, (planes, planes, 3, 3), jnp.float32)
    w1 = deconv_weight_to_hwio(wt1)
    w2 = deconv_weight_to_hwio(wt2)
    g1 = 1.0 + 0.1 * jax.random.normal(k3, (planes,), jnp.float32)
    b1 = 0.1 * jax.random.normal(k4, (planes,), jnp.float32)
    g2 = 1.0 + 0.1 * jax.random.normal(k5, (planes,), jnp.float32)
    b2 = 0.1 * jax.random.normal(k6, (planes,), jnp.float32)
    return (w1, g1, b1, w2, g2, b2)


if __name__ == "__main__":
    key = jax.random.PRNGKey(0)
    fwd = jax.jit(deblock_forward)

    # Primary small shape (exercises the 2-images-per-lane packing and interior
    # seam masking) + a second shape with WC=128 (no packing, multi-image block).
    for (N, C, H, W) in [(2, 4, 16, 16), (2, 16, 8, 8)]:
        kx, kp = jax.random.split(jax.random.fold_in(key, C))
        x = jax.random.normal(kx, (N, C, H, W), jnp.float32)
        params = init_params(kp, C, C)

        out = jax.block_until_ready(fwd(x, params))
        ref = reference_forward(x, params)
        assert out.shape == (N, C, H, W)
        err = float(jnp.max(jnp.abs(out - ref)))
        # bf16 MXU operands + bf16 y1 activation storage (f32 accumulation) vs. the
        # all-f32 reference -> loosened tolerance; structural errors would be O(1).
        assert err < 8e-2, f"shape {(N, C, H, W)}: max abs diff {err}"

    print("KERNEL_OK")
</pallas_src>

<mosaic_0001>
module attributes {stable_mosaic.version = 11 : i64} {
  func.func @kernel(%arg0: i32, %arg1: memref<16x128xf32, #tpu.memory_space<vmem>>, %arg2: memref<3x128x128xbf16, #tpu.memory_space<vmem>>, %arg3: memref<16x128xbf16, #tpu.memory_space<vmem>>, %arg4: memref<1x2x128xf32, #tpu.memory_space<vmem>>) attributes {dimension_semantics = [#tpu.dimension_semantics<parallel>], iteration_bounds = array<i64: 1>, scalar_prefetch = 0 : i64, scratch_operands = 0 : i64, tpu.core_type = #tpu.core_type<tc>, window_params = [{transform_indices = @transform_0, window_bounds = array<i64: 16, 128>}, {pipeline_mode = #tpu.pipeline_mode<synchronous>, transform_indices = @transform_1, window_bounds = array<i64: 3, 128, 128>}, {transform_indices = @transform_2, window_bounds = array<i64: 16, 128>}, {transform_indices = @transform_3, window_bounds = array<i64: 1, 2, 128>}]} {
    %c0 = arith.constant 0 : index
    %c0_0 = arith.constant 0 : index
    %0 = vector.load %arg1[%c0, %c0_0] : memref<16x128xf32, #tpu.memory_space<vmem>>, vector<16x128xf32>
    %1 = tpu.iota {dimensions = array<i32: 0>} : vector<16x1xi32>
    %c16_i32 = arith.constant 16 : i32
    %c0_i32 = arith.constant 0 : i32
    %2 = arith.cmpi eq, %c16_i32, %c0_i32 : i32
    %c1_i32 = arith.constant 1 : i32
    %3 = arith.select %2, %c1_i32, %c16_i32 : i32
    %4 = vector.broadcast %3 : i32 to vector<16x1xi32>
    %5 = arith.remsi %1, %4 : vector<16x1xi32>
    %c0_i32_1 = arith.constant 0 : i32
    %6 = vector.broadcast %c0_i32_1 : i32 to vector<16x1xi32>
    %7 = arith.cmpi ne, %5, %6 : vector<16x1xi32>
    %c0_i32_2 = arith.constant 0 : i32
    %8 = vector.broadcast %c0_i32_2 : i32 to vector<16x1xi32>
    %9 = arith.cmpi slt, %5, %8 : vector<16x1xi32>
    %c0_i32_3 = arith.constant 0 : i32
    %10 = arith.cmpi slt, %3, %c0_i32_3 : i32
    %11 = vector.broadcast %10 : i1 to vector<16x1xi1>
    %12 = vector.broadcast %11 : vector<16x1xi1> to vector<16x1xi1>
    %13 = arith.xori %9, %12 : vector<16x1xi1>
    %14 = arith.andi %13, %7 : vector<16x1xi1>
    %15 = vector.broadcast %3 : i32 to vector<16x1xi32>
    %16 = arith.addi %5, %15 : vector<16x1xi32>
    %17 = arith.select %14, %16, %5 : vector<16x1xi1>, vector<16x1xi32>
    %c0_i32_4 = arith.constant 0 : i32
    %18 = vector.broadcast %c0_i32_4 : i32 to vector<16x1xi32>
    %19 = arith.cmpi eq, %17, %18 : vector<16x1xi32>
    %c1_i32_5 = arith.constant 1 : i32
    %20 = tpu.dynamic_rotate %0 by %c1_i32_5 dim 0 : vector<16x128xf32>, i32 -> vector<16x128xf32>
    %cst = arith.constant 0.000000e+00 : f32
    %21 = vector.shape_cast %19 : vector<16x1xi1> to vector<16x1xi1>
    %22 = vector.broadcast %21 : vector<16x1xi1> to vector<16x128xi1>
    %23 = vector.broadcast %cst : f32 to vector<16x128xf32>
    %24 = arith.select %22, %23, %20 : vector<16x128xi1>, vector<16x128xf32>
    %25 = arith.truncf %24 : vector<16x128xf32> to vector<16x128xbf16>
    %c15_i32 = arith.constant 15 : i32
    %26 = vector.broadcast %c15_i32 : i32 to vector<16x1xi32>
    %27 = arith.cmpi eq, %17, %26 : vector<16x1xi32>
    %c15_i32_6 = arith.constant 15 : i32
    %28 = tpu.dynamic_rotate %0 by %c15_i32_6 dim 0 : vector<16x128xf32>, i32 -> vector<16x128xf32>
    %cst_7 = arith.constant 0.000000e+00 : f32
    %29 = vector.shape_cast %27 : vector<16x1xi1> to vector<16x1xi1>
    %30 = vector.broadcast %29 : vector<16x1xi1> to vector<16x128xi1>
    %31 = vector.broadcast %cst_7 : f32 to vector<16x128xf32>
    %32 = arith.select %30, %31, %28 : vector<16x128xi1>, vector<16x128xf32>
    %33 = arith.truncf %32 : vector<16x128xf32> to vector<16x128xbf16>
    %34 = arith.truncf %0 : vector<16x128xf32> to vector<16x128xbf16>
    %c1 = arith.constant 1 : index
    %c0_8 = arith.constant 0 : index
    %c0_9 = arith.constant 0 : index
    %35 = vector.load %arg2[%c1, %c0_8, %c0_9] : memref<3x128x128xbf16, #tpu.memory_space<vmem>>, vector<1x128x128xbf16>
    %36 = vector.shape_cast %35 : vector<1x128x128xbf16> to vector<128x128xbf16>
    %cst_10 = arith.constant dense<0.000000e+00> : vector<16x128xf32>
    %37 = tpu.matmul %34, %36, %cst_10 {dimension_numbers = #tpu.dot_dimension_numbers<[1], [0], [0], [1], [0, 0, 1, 1], [], []>} : vector<16x128xbf16>, vector<128x128xbf16>, vector<16x128xf32> -> vector<16x128xf32>
    %c0_11 = arith.constant 0 : index
    %c0_12 = arith.constant 0 : index
    %c0_13 = arith.constant 0 : index
    %38 = vector.load %arg2[%c0_11, %c0_12, %c0_13] : memref<3x128x128xbf16, #tpu.memory_space<vmem>>, vector<1x128x128xbf16>
    %39 = vector.shape_cast %38 : vector<1x128x128xbf16> to vector<128x128xbf16>
    %cst_14 = arith.constant dense<0.000000e+00> : vector<16x128xf32>
    %40 = tpu.matmul %25, %39, %cst_14 {dimension_numbers = #tpu.dot_dimension_numbers<[1], [0], [0], [1], [0, 0, 1, 1], [], []>} : vector<16x128xbf16>, vector<128x128xbf16>, vector<16x128xf32> -> vector<16x128xf32>
    %41 = arith.addf %37, %40 : vector<16x128xf32>
    %c2 = arith.constant 2 : index
    %c0_15 = arith.constant 0 : index
    %c0_16 = arith.constant 0 : index
    %42 = vector.load %arg2[%c2, %c0_15, %c0_16] : memref<3x128x128xbf16, #tpu.memory_space<vmem>>, vector<1x128x128xbf16>
    %43 = vector.shape_cast %42 : vector<1x128x128xbf16> to vector<128x128xbf16>
    %cst_17 = arith.constant dense<0.000000e+00> : vector<16x128xf32>
    %44 = tpu.matmul %33, %43, %cst_17 {dimension_numbers = #tpu.dot_dimension_numbers<[1], [0], [0], [1], [0, 0, 1, 1], [], []>} : vector<16x128xbf16>, vector<128x128xbf16>, vector<16x128xf32> -> vector<16x128xf32>
    %45 = arith.addf %41, %44 : vector<16x128xf32>
    %46 = arith.truncf %45 : vector<16x128xf32> to vector<16x128xbf16>
    %c0_18 = arith.constant 0 : index
    %c0_19 = arith.constant 0 : index
    %47 = vector.load %arg3[%c0_18, %c0_19] : memref<16x128xbf16, #tpu.memory_space<vmem>>, vector<16x128xbf16>
    tpu.vector_store %arg3[%c0_18, %c0_19], %46 {strides = array<i32>} : memref<16x128xbf16, #tpu.memory_space<vmem>>, vector<16x128xbf16>,
    %cst_20 = arith.constant dense<0.000000e+00> : vector<128xf32>
    %48 = vector.multi_reduction <add>, %45, %cst_20 [0] : vector<16x128xf32> to vector<128xf32>
    %49 = vector.shape_cast %48 : vector<128xf32> to vector<1x128xf32>
    %50 = arith.mulf %45, %45 : vector<16x128xf32>
    %cst_21 = arith.constant dense<0.000000e+00> : vector<128xf32>
    %51 = vector.multi_reduction <add>, %50, %cst_21 [0] : vector<16x128xf32> to vector<128xf32>
    %52 = vector.shape_cast %51 : vector<128xf32> to vector<1x128xf32>
    %53 = tpu.concatenate %49, %52 in 0 : vector<1x128xf32>, vector<1x128xf32> -> vector<2x128xf32>
    %c0_22 = arith.constant 0 : index
    %c0_23 = arith.constant 0 : index
    %c0_24 = arith.constant 0 : index
    %54 = vector.load %arg4[%c0_22, %c0_23, %c0_24] : memref<1x2x128xf32, #tpu.memory_space<vmem>>, vector<1x2x128xf32>
    %55 = vector.shape_cast %54 : vector<1x2x128xf32> to vector<2x128xf32>
    %56 = vector.shape_cast %53 : vector<2x128xf32> to vector<1x2x128xf32>
    tpu.vector_store %arg4[%c0_22, %c0_23, %c0_24], %56 {strides = array<i32>} : memref<1x2x128xf32, #tpu.memory_space<vmem>>, vector<1x2x128xf32>,
    return
  }
  func.func @transform_0(%arg0: i32) -> (i32, i32) {
    %c0_i32 = arith.constant 0 : i32
    %c0_i32_0 = arith.constant 0 : i32
    return %arg0, %c0_i32 : i32, i32
  }
  func.func @transform_1(%arg0: i32) -> (i32, i32, i32) {
    %c0_i32 = arith.constant 0 : i32
    %c0_i32_0 = arith.constant 0 : i32
    %c0_i32_1 = arith.constant 0 : i32
    %c0_i32_2 = arith.constant 0 : i32
    return %c0_i32, %c0_i32_0, %c0_i32_1 : i32, i32, i32
  }
  func.func @transform_2(%arg0: i32) -> (i32, i32) {
    %c0_i32 = arith.constant 0 : i32
    %c0_i32_0 = arith.constant 0 : i32
    return %arg0, %c0_i32 : i32, i32
  }
  func.func @transform_3(%arg0: i32) -> (i32, i32, i32) {
    %c0_i32 = arith.constant 0 : i32
    %c0_i32_0 = arith.constant 0 : i32
    %c0_i32_1 = arith.constant 0 : i32
    return %arg0, %c0_i32, %c0_i32_0 : i32, i32, i32
  }
}

module attributes {stable_mosaic.version = 11 : i64} {
  func.func @kernel(%arg0: i32, %arg1: memref<16x128xbf16, #tpu.memory_space<vmem>>, %arg2: memref<3x128x128xbf16, #tpu.memory_space<vmem>>, %arg3: memref<1x128xf32, #tpu.memory_space<vmem>>, %arg4: memref<1x128xf32, #tpu.memory_space<vmem>>, %arg5: memref<16x128xf32, #tpu.memory_space<vmem>>, %arg6: memref<1x2x128xf32, #tpu.memory_space<vmem>>) attributes {dimension_semantics = [#tpu.dimension_semantics<parallel>], iteration_bounds = array<i64: 1>, scalar_prefetch = 0 : i64, scratch_operands = 0 : i64, tpu.core_type = #tpu.core_type<tc>, window_params = [{transform_indices = @transform_0, window_bounds = array<i64: 16, 128>}, {pipeline_mode = #tpu.pipeline_mode<synchronous>, transform_indices = @transform_1, window_bounds = array<i64: 3, 128, 128>}, {pipeline_mode = #tpu.pipeline_mode<synchronous>, transform_indices = @transform_2, window_bounds = array<i64: 1, 128>}, {pipeline_mode = #tpu.pipeline_mode<synchronous>, transform_indices = @transform_3, window_bounds = array<i64: 1, 128>}, {transform_indices = @transform_4, window_bounds = array<i64: 16, 128>}, {transform_indices = @transform_5, window_bounds = array<i64: 1, 2, 128>}]} {
    %c0 = arith.constant 0 : index
    %c0_0 = arith.constant 0 : index
    %0 = vector.load %arg1[%c0, %c0_0] : memref<16x128xbf16, #tpu.memory_space<vmem>>, vector<16x128xbf16>
    %1 = arith.extf %0 : vector<16x128xbf16> to vector<16x128xf32>
    %c0_1 = arith.constant 0 : index
    %c0_2 = arith.constant 0 : index
    %2 = vector.load %arg3[%c0_1, %c0_2] : memref<1x128xf32, #tpu.memory_space<vmem>>, vector<1x128xf32>
    %3 = vector.broadcast %2 : vector<1x128xf32> to vector<16x128xf32>
    %4 = arith.mulf %1, %3 : vector<16x128xf32>
    %c0_3 = arith.constant 0 : index
    %c0_4 = arith.constant 0 : index
    %5 = vector.load %arg4[%c0_3, %c0_4] : memref<1x128xf32, #tpu.memory_space<vmem>>, vector<1x128xf32>
    %6 = vector.broadcast %5 : vector<1x128xf32> to vector<16x128xf32>
    %7 = arith.addf %4, %6 : vector<16x128xf32>
    %cst = arith.constant 0.000000e+00 : f32
    %8 = vector.broadcast %cst : f32 to vector<16x128xf32>
    %9 = arith.maximumf %7, %8 : vector<16x128xf32>
    %10 = tpu.iota {dimensions = array<i32: 0>} : vector<16x1xi32>
    %c16_i32 = arith.constant 16 : i32
    %c0_i32 = arith.constant 0 : i32
    %11 = arith.cmpi eq, %c16_i32, %c0_i32 : i32
    %c1_i32 = arith.constant 1 : i32
    %12 = arith.select %11, %c1_i32, %c16_i32 : i32
    %13 = vector.broadcast %12 : i32 to vector<16x1xi32>
    %14 = arith.remsi %10, %13 : vector<16x1xi32>
    %c0_i32_5 = arith.constant 0 : i32
    %15 = vector.broadcast %c0_i32_5 : i32 to vector<16x1xi32>
    %16 = arith.cmpi ne, %14, %15 : vector<16x1xi32>
    %c0_i32_6 = arith.constant 0 : i32
    %17 = vector.broadcast %c0_i32_6 : i32 to vector<16x1xi32>
    %18 = arith.cmpi slt, %14, %17 : vector<16x1xi32>
    %c0_i32_7 = arith.constant 0 : i32
    %19 = arith.cmpi slt, %12, %c0_i32_7 : i32
    %20 = vector.broadcast %19 : i1 to vector<16x1xi1>
    %21 = vector.broadcast %20 : vector<16x1xi1> to vector<16x1xi1>
    %22 = arith.xori %18, %21 : vector<16x1xi1>
    %23 = arith.andi %22, %16 : vector<16x1xi1>
    %24 = vector.broadcast %12 : i32 to vector<16x1xi32>
    %25 = arith.addi %14, %24 : vector<16x1xi32>
    %26 = arith.select %23, %25, %14 : vector<16x1xi1>, vector<16x1xi32>
    %c0_i32_8 = arith.constant 0 : i32
    %27 = vector.broadcast %c0_i32_8 : i32 to vector<16x1xi32>
    %28 = arith.cmpi eq, %26, %27 : vector<16x1xi32>
    %c1_i32_9 = arith.constant 1 : i32
    %29 = tpu.dynamic_rotate %9 by %c1_i32_9 dim 0 : vector<16x128xf32>, i32 -> vector<16x128xf32>
    %cst_10 = arith.constant 0.000000e+00 : f32
    %30 = vector.shape_cast %28 : vector<16x1xi1> to vector<16x1xi1>
    %31 = vector.broadcast %30 : vector<16x1xi1> to vector<16x128xi1>
    %32 = vector.broadcast %cst_10 : f32 to vector<16x128xf32>
    %33 = arith.select %31, %32, %29 : vector<16x128xi1>, vector<16x128xf32>
    %34 = arith.truncf %33 : vector<16x128xf32> to vector<16x128xbf16>
    %c15_i32 = arith.constant 15 : i32
    %35 = vector.broadcast %c15_i32 : i32 to vector<16x1xi32>
    %36 = arith.cmpi eq, %26, %35 : vector<16x1xi32>
    %c15_i32_11 = arith.constant 15 : i32
    %37 = tpu.dynamic_rotate %9 by %c15_i32_11 dim 0 : vector<16x128xf32>, i32 -> vector<16x128xf32>
    %cst_12 = arith.constant 0.000000e+00 : f32
    %38 = vector.shape_cast %36 : vector<16x1xi1> to vector<16x1xi1>
    %39 = vector.broadcast %38 : vector<16x1xi1> to vector<16x128xi1>
    %40 = vector.broadcast %cst_12 : f32 to vector<16x128xf32>
    %41 = arith.select %39, %40, %37 : vector<16x128xi1>, vector<16x128xf32>
    %42 = arith.truncf %41 : vector<16x128xf32> to vector<16x128xbf16>
    %43 = arith.truncf %9 : vector<16x128xf32> to vector<16x128xbf16>
    %c1 = arith.constant 1 : index
    %c0_13 = arith.constant 0 : index
    %c0_14 = arith.constant 0 : index
    %44 = vector.load %arg2[%c1, %c0_13, %c0_14] : memref<3x128x128xbf16, #tpu.memory_space<vmem>>, vector<1x128x128xbf16>
    %45 = vector.shape_cast %44 : vector<1x128x128xbf16> to vector<128x128xbf16>
    %cst_15 = arith.constant dense<0.000000e+00> : vector<16x128xf32>
    %46 = tpu.matmul %43, %45, %cst_15 {dimension_numbers = #tpu.dot_dimension_numbers<[1], [0], [0], [1], [0, 0, 1, 1], [], []>} : vector<16x128xbf16>, vector<128x128xbf16>, vector<16x128xf32> -> vector<16x128xf32>
    %c0_16 = arith.constant 0 : index
    %c0_17 = arith.constant 0 : index
    %c0_18 = arith.constant 0 : index
    %47 = vector.load %arg2[%c0_16, %c0_17, %c0_18] : memref<3x128x128xbf16, #tpu.memory_space<vmem>>, vector<1x128x128xbf16>
    %48 = vector.shape_cast %47 : vector<1x128x128xbf16> to vector<128x128xbf16>
    %cst_19 = arith.constant dense<0.000000e+00> : vector<16x128xf32>
    %49 = tpu.matmul %34, %48, %cst_19 {dimension_numbers = #tpu.dot_dimension_numbers<[1], [0], [0], [1], [0, 0, 1, 1], [], []>} : vector<16x128xbf16>, vector<128x128xbf16>, vector<16x128xf32> -> vector<16x128xf32>
    %50 = arith.addf %46, %49 : vector<16x128xf32>
    %c2 = arith.constant 2 : index
    %c0_20 = arith.constant 0 : index
    %c0_21 = arith.constant 0 : index
    %51 = vector.load %arg2[%c2, %c0_20, %c0_21] : memref<3x128x128xbf16, #tpu.memory_space<vmem>>, vector<1x128x128xbf16>
    %52 = vector.shape_cast %51 : vector<1x128x128xbf16> to vector<128x128xbf16>
    %cst_22 = arith.constant dense<0.000000e+00> : vector<16x128xf32>
    %53 = tpu.matmul %42, %52, %cst_22 {dimension_numbers = #tpu.dot_dimension_numbers<[1], [0], [0], [1], [0, 0, 1, 1], [], []>} : vector<16x128xbf16>, vector<128x128xbf16>, vector<16x128xf32> -> vector<16x128xf32>
    %54 = arith.addf %50, %53 : vector<16x128xf32>
    %c0_23 = arith.constant 0 : index
    %c0_24 = arith.constant 0 : index
    %55 = vector.load %arg5[%c0_23, %c0_24] : memref<16x128xf32, #tpu.memory_space<vmem>>, vector<16x128xf32>
    tpu.vector_store %arg5[%c0_23, %c0_24], %54 {strides = array<i32>} : memref<16x128xf32, #tpu.memory_space<vmem>>, vector<16x128xf32>,
    %cst_25 = arith.constant dense<0.000000e+00> : vector<128xf32>
    %56 = vector.multi_reduction <add>, %54, %cst_25 [0] : vector<16x128xf32> to vector<128xf32>
    %57 = vector.shape_cast %56 : vector<128xf32> to vector<1x128xf32>
    %58 = arith.mulf %54, %54 : vector<16x128xf32>
    %cst_26 = arith.constant dense<0.000000e+00> : vector<128xf32>
    %59 = vector.multi_reduction <add>, %58, %cst_26 [0] : vector<16x128xf32> to vector<128xf32>
    %60 = vector.shape_cast %59 : vector<128xf32> to vector<1x128xf32>
    %61 = tpu.concatenate %57, %60 in 0 : vector<1x128xf32>, vector<1x128xf32> -> vector<2x128xf32>
    %c0_27 = arith.constant 0 : index
    %c0_28 = arith.constant 0 : index
    %c0_29 = arith.constant 0 : index
    %62 = vector.load %arg6[%c0_27, %c0_28, %c0_29] : memref<1x2x128xf32, #tpu.memory_space<vmem>>, vector<1x2x128xf32>
    %63 = vector.shape_cast %62 : vector<1x2x128xf32> to vector<2x128xf32>
    %64 = vector.shape_cast %61 : vector<2x128xf32> to vector<1x2x128xf32>
    tpu.vector_store %arg6[%c0_27, %c0_28, %c0_29], %64 {strides = array<i32>} : memref<1x2x128xf32, #tpu.memory_space<vmem>>, vector<1x2x128xf32>,
    return
  }
  func.func @transform_0(%arg0: i32) -> (i32, i32) {
    %c0_i32 = arith.constant 0 : i32
    %c0_i32_0 = arith.constant 0 : i32
    return %arg0, %c0_i32 : i32, i32
  }
  func.func @transform_1(%arg0: i32) -> (i32, i32, i32) {
    %c0_i32 = arith.constant 0 : i32
    %c0_i32_0 = arith.constant 0 : i32
    %c0_i32_1 = arith.constant 0 : i32
    %c0_i32_2 = arith.constant 0 : i32
    return %c0_i32, %c0_i32_0, %c0_i32_1 : i32, i32, i32
  }
  func.func @transform_2(%arg0: i32) -> (i32, i32) {
    %c0_i32 = arith.constant 0 : i32
    %c0_i32_0 = arith.constant 0 : i32
    %c0_i32_1 = arith.constant 0 : i32
    return %c0_i32, %c0_i32_0 : i32, i32
  }
  func.func @transform_3(%arg0: i32) -> (i32, i32) {
    %c0_i32 = arith.constant 0 : i32
    %c0_i32_0 = arith.constant 0 : i32
    %c0_i32_1 = arith.constant 0 : i32
    return %c0_i32, %c0_i32_0 : i32, i32
  }
  func.func @transform_4(%arg0: i32) -> (i32, i32) {
    %c0_i32 = arith.constant 0 : i32
    %c0_i32_0 = arith.constant 0 : i32
    return %arg0, %c0_i32 : i32, i32
  }
  func.func @transform_5(%arg0: i32) -> (i32, i32, i32) {
    %c0_i32 = arith.constant 0 : i32
    %c0_i32_0 = arith.constant 0 : i32
    %c0_i32_1 = arith.constant 0 : i32
    return %arg0, %c0_i32, %c0_i32_0 : i32, i32, i32
  }
}

module attributes {stable_mosaic.version = 11 : i64} {
  func.func @_final_kernel(%arg0: i32, %arg1: memref<16x128xf32, #tpu.memory_space<vmem>>, %arg2: memref<16x128xf32, #tpu.memory_space<vmem>>, %arg3: memref<1x128xf32, #tpu.memory_space<vmem>>, %arg4: memref<1x128xf32, #tpu.memory_space<vmem>>, %arg5: memref<16x128xf32, #tpu.memory_space<vmem>>) attributes {dimension_semantics = [#tpu.dimension_semantics<parallel>], iteration_bounds = array<i64: 1>, scalar_prefetch = 0 : i64, scratch_operands = 0 : i64, tpu.core_type = #tpu.core_type<tc>, window_params = [{transform_indices = @transform_0, window_bounds = array<i64: 16, 128>}, {transform_indices = @transform_1, window_bounds = array<i64: 16, 128>}, {pipeline_mode = #tpu.pipeline_mode<synchronous>, transform_indices = @transform_2, window_bounds = array<i64: 1, 128>}, {pipeline_mode = #tpu.pipeline_mode<synchronous>, transform_indices = @transform_3, window_bounds = array<i64: 1, 128>}, {transform_indices = @transform_4, window_bounds = array<i64: 16, 128>}]} {
    %c0 = arith.constant 0 : index
    %c0_0 = arith.constant 0 : index
    %0 = vector.load %arg1[%c0, %c0_0] : memref<16x128xf32, #tpu.memory_space<vmem>>, vector<16x128xf32>
    %c0_1 = arith.constant 0 : index
    %c0_2 = arith.constant 0 : index
    %1 = vector.load %arg3[%c0_1, %c0_2] : memref<1x128xf32, #tpu.memory_space<vmem>>, vector<1x128xf32>
    %2 = vector.broadcast %1 : vector<1x128xf32> to vector<16x128xf32>
    %3 = arith.mulf %0, %2 : vector<16x128xf32>
    %c0_3 = arith.constant 0 : index
    %c0_4 = arith.constant 0 : index
    %4 = vector.load %arg4[%c0_3, %c0_4] : memref<1x128xf32, #tpu.memory_space<vmem>>, vector<1x128xf32>
    %5 = vector.broadcast %4 : vector<1x128xf32> to vector<16x128xf32>
    %6 = arith.addf %3, %5 : vector<16x128xf32>
    %c0_5 = arith.constant 0 : index
    %c0_6 = arith.constant 0 : index
    %7 = vector.load %arg2[%c0_5, %c0_6] : memref<16x128xf32, #tpu.memory_space<vmem>>, vector<16x128xf32>
    %8 = arith.addf %6, %7 : vector<16x128xf32>
    %cst = arith.constant 0.000000e+00 : f32
    %9 = vector.broadcast %cst : f32 to vector<16x128xf32>
    %10 = arith.maximumf %8, %9 : vector<16x128xf32>
    %c0_7 = arith.constant 0 : index
    %c0_8 = arith.constant 0 : index
    %11 = vector.load %arg5[%c0_7, %c0_8] : memref<16x128xf32, #tpu.memory_space<vmem>>, vector<16x128xf32>
    tpu.vector_store %arg5[%c0_7, %c0_8], %10 {strides = array<i32>} : memref<16x128xf32, #tpu.memory_space<vmem>>, vector<16x128xf32>,
    return
  }
  func.func @transform_0(%arg0: i32) -> (i32, i32) {
    %c0_i32 = arith.constant 0 : i32
    %c0_i32_0 = arith.constant 0 : i32
    return %arg0, %c0_i32 : i32, i32
  }
  func.func @transform_1(%arg0: i32) -> (i32, i32) {
    %c0_i32 = arith.constant 0 : i32
    %c0_i32_0 = arith.constant 0 : i32
    return %arg0, %c0_i32 : i32, i32
  }
  func.func @transform_2(%arg0: i32) -> (i32, i32) {
    %c0_i32 = arith.constant 0 : i32
    %c0_i32_0 = arith.constant 0 : i32
    %c0_i32_1 = arith.constant 0 : i32
    return %c0_i32, %c0_i32_0 : i32, i32
  }
  func.func @transform_3(%arg0: i32) -> (i32, i32) {
    %c0_i32 = arith.constant 0 : i32
    %c0_i32_0 = arith.constant 0 : i32
    %c0_i32_1 = arith.constant 0 : i32
    return %c0_i32, %c0_i32_0 : i32, i32
  }
  func.func @transform_4(%arg0: i32) -> (i32, i32) {
    %c0_i32 = arith.constant 0 : i32
    %c0_i32_0 = arith.constant 0 : i32
    return %arg0, %c0_i32 : i32, i32
  }
}

</mosaic_0001>

<llo_original>
// kernel: tile.23
$region0: #{tile.23}
  #allocation0 [shape = 's32[1]{0}', space=sflag, size = 0x4, scoped, tag = 'scoped memory for tile.23']
  %s0 = inlined_call_operand.vmem [shape: f32[4], index: 0, kind: input, shape index: {}]
  %s1 = inlined_call_operand.vmem [shape: f32[32,4], index: 1, kind: output, shape index: {}]
  // Predicated region
  $region2: #{tile.23} parent=0 // pred_check
    _
  $region3: #{tile.23} parent=0 // pred_check_branch
    %3 = sbr.rel (0) target = $region5
  $region4: #{tile.23} parent=0 // pred_region
    _
  $region5: #{tile.23} parent=0 // pred_fallthru
    _
  %v4 = vld [vmem:[%s0] ss:$0 sm:$0xff]
  %5 = vst [vmem:[%s1] sm:$0xff] %v4
  %s6 = scalar_lea.vmem %s1, 8
  %7 = vst [vmem:[%s6] sm:$0xff] %v4
  %s8 = scalar_lea.vmem %s1, 16
  %9 = vst [vmem:[%s8] sm:$0xff] %v4
  %s10 = scalar_lea.vmem %s1, 24
  %11 = vst [vmem:[%s10] sm:$0xff] %v4

// kernel: tile.24
$region0: #{tile.24}
  %s0 = inlined_call_operand.vmem [shape: f32[32,4], index: 0, kind: input, shape index: {}]
  %s1 = inlined_call_operand.vmem [shape: f32[1,128], index: 1, kind: output, shape index: {}]
  $region1: #{tile.24} parent=0
    #allocation0 [shape = 'u8[4096]{0}', space=vmem, size = 0x1000, scoped, tag = 'scoped mem for output reshape']
    %v2 = vld [vmem:[%s0] sm:$0x1]
    %vm3 = vcmask 31744
    %4 = vst.msk [vmem:[#allocation0] sm:$0x1] %vm3, %v2
    %s5 = scalar_lea.vmem %s0, 31
    %v6 = vld [vmem:[%s5] sm:$0x1]
    %7 = vrot.lane.b32.xlu0 %v6, 124
    %v8 = vpop.permute.xlu0 %7
    %vm9 = vcmask 1048544
    %10 = vst.msk [vmem:[#allocation0] sm:$0x1] %vm9, %v8
    %s11 = scalar_lea.vmem %s0, 30
    %v12 = vld [vmem:[%s11] sm:$0x1]
    %13 = vrot.lane.b32.xlu0 %v12, 120
    %v14 = vpop.permute.xlu0 %13
    %vm15 = vcmask 1015744
    %16 = vst.msk [vmem:[#allocation0] sm:$0x1] %vm15, %v14
    %s17 = scalar_lea.vmem %s0, 29
    %v18 = vld [vmem:[%s17] sm:$0x1]
    %19 = vrot.lane.b32.xlu0 %v18, 116
    %v20 = vpop.permute.xlu0 %19
    %vm21 = vcmask 982944
    %22 = vst.msk [vmem:[#allocation0] sm:$0x1] %vm21, %v20
    %s23 = scalar_lea.vmem %s0, 28
    %v24 = vld [vmem:[%s23] sm:$0x1]
    %25 = vrot.lane.b32.xlu0 %v24, 112
    %v26 = vpop.permute.xlu0 %25
    %vm27 = vcmask 950144
    %28 = vst.msk [vmem:[#allocation0] sm:$0x1] %vm27, %v26
    %s29 = scalar_lea.vmem %s0, 27
    %v30 = vld [vmem:[%s29] sm:$0x1]
    %31 = vrot.lane.b32.xlu0 %v30, 108
    %v32 = vpop.permute.xlu0 %31
    %vm33 = vcmask 917344
    %34 = vst.msk [vmem:[#allocation0] sm:$0x1] %vm33, %v32
    %s35 = scalar_lea.vmem %s0, 26
    %v36 = vld [vmem:[%s35] sm:$0x1]
    %37 = vrot.lane.b32.xlu0 %v36, 104
    %v38 = vpop.permute.xlu0 %37
    %vm39 = vcmask 884544
    %40 = vst.msk [vmem:[#allocation0] sm:$0x1] %vm39, %v38
    %s41 = scalar_lea.vmem %s0, 25
    %v42 = vld [vmem:[%s41] sm:$0x1]
    %43 = vrot.lane.b32.xlu0 %v42, 100
    %v44 = vpop.permute.xlu0 %43
    %vm45 = vcmask 851744
    %46 = vst.msk [vmem:[#allocation0] sm:$0x1] %vm45, %v44
    %s47 = scalar_lea.vmem %s0, 24
    %v48 = vld [vmem:[%s47] sm:$0x1]
    %49 = vrot.lane.b32.xlu0 %v48, 96
    %v50 = vpop.permute.xlu0 %49
    %vm51 = vcmask 818944
    %52 = vst.msk [vmem:[#allocation0] sm:$0x1] %vm51, %v50
    %s53 = scalar_lea.vmem %s0, 23
    %v54 = vld [vmem:[%s53] sm:$0x1]
    %55 = vrot.lane.b32.xlu0 %v54, 92
    %v56 = vpop.permute.xlu0 %55
    %vm57 = vcmask 786144
    %58 = vst.msk [vmem:[#allocation0] sm:$0x1] %vm57, %v56
    %s59 = scalar_lea.vmem %s0, 22
    %v60 = vld [vmem:[%s59] sm:$0x1]
    %61 = vrot.lane.b32.xlu0 %v60, 88
    %v62 = vpop.permute.xlu0 %61
    %vm63 = vcmask 753344
    %64 = vst.msk [vmem:[#allocation0] sm:$0x1] %vm63, %v62
    %s65 = scalar_lea.vmem %s0, 21
    %v66 = vld [vmem:[%s65] sm:$0x1]
    %67 = vrot.lane.b32.xlu0 %v66, 84
    %v68 = vpop.permute.xlu0 %67
    %vm69 = vcmask 720544
    %70 = vst.msk [vmem:[#allocation0] sm:$0x1] %vm69, %v68
    %s71 = scalar_lea.vmem %s0, 20
    %v72 = vld [vmem:[%s71] sm:$0x1]
    %73 = vrot.lane.b32.xlu0 %v72, 80
    %v74 = vpop.permute.xlu0 %73
    %vm75 = vcmask 687744
    %76 = vst.msk [vmem:[#allocation0] sm:$0x1] %vm75, %v74
    %s77 = scalar_lea.vmem %s0, 19
    %v78 = vld [vmem:[%s77] sm:$0x1]
    %79 = vrot.lane.b32.xlu0 %v78, 76
    %v80 = vpop.permute.xlu0 %79
    %vm81 = vcmask 654944
    %82 = vst.msk [vmem:[#allocation0] sm:$0x1] %vm81, %v80
    %s83 = scalar_lea.vmem %s0, 18
    %v84 = vld [vmem:[%s83] sm:$0x1]
    %85 = vrot.lane.b32.xlu0 %v84, 72
    %v86 = vpop.permute.xlu0 %85
    %vm87 = vcmask 622144
    %88 = vst.msk [vmem:[#allocation0] sm:$0x1] %vm87, %v86
    %s89 = scalar_lea.vmem %s0, 17
    %v90 = vld [vmem:[%s89] sm:$0x1]
    %91 = vrot.lane.b32.xlu0 %v90, 68
    %v92 = vpop.permute.xlu0 %91
    %vm93 = vcmask 589344
    %94 = vst.msk [vmem:[#allocation0] sm:$0x1] %vm93, %v92
    %s95 = scalar_lea.vmem %s0, 16
    %v96 = vld [vmem:[%s95] sm:$0x1]
    %97 = vrot.lane.b32.xlu0 %v96, 64
    %v98 = vpop.permute.xlu0 %97
    %vm99 = vcmask 556544
    %100 = vst.msk [vmem:[#allocation0] sm:$0x1] %vm99, %v98
    %s101 = scalar_lea.vmem %s0, 15
    %v102 = vld [vmem:[%s101] sm:$0x1]
    %103 = vrot.lane.b32.xlu0 %v102, 60
    %v104 = vpop.permute.xlu0 %103
    %vm105 = vcmask 523744
    %106 = vst.msk [vmem:[#allocation0] sm:$0x1] %vm105, %v104
    %s107 = scalar_lea.vmem %s0, 14
    %v108 = vld [vmem:[%s107] sm:$0x1]
    %109 = vrot.lane.b32.xlu0 %v108, 56
    %v110 = vpop.permute.xlu0 %109
    %vm111 = vcmask 490944
    %112 = vst.msk [vmem:[#allocation0] sm:$0x1] %vm111, %v110
    %s113 = scalar_lea.vmem %s0, 13
    %v114 = vld [vmem:[%s113] sm:$0x1]
    %115 = vrot.lane.b32.xlu0 %v114, 52
    %v116 = vpop.permute.xlu0 %115
    %vm117 = vcmask 458144
    %118 = vst.msk [vmem:[#allocation0] sm:$0x1] %vm117, %v116
    %s119 = scalar_lea.vmem %s0, 12
    %v120 = vld [vmem:[%s119] sm:$0x1]
    %121 = vrot.lane.b32.xlu0 %v120, 48
    %v122 = vpop.permute.xlu0 %121
    %vm123 = vcmask 425344
    %124 = vst.msk [vmem:[#allocation0] sm:$0x1] %vm123, %v122
    %s125 = scalar_lea.vmem %s0, 11
    %v126 = vld [vmem:[%s125] sm:$0x1]
    %127 = vrot.lane.b32.xlu0 %v126, 44
    %v128 = vpop.permute.xlu0 %127
    %vm129 = vcmask 392544
    %130 = vst.msk [vmem:[#allocation0] sm:$0x1] %vm129, %v128
    %s131 = scalar_lea.vmem %s0, 10
    %v132 = vld [vmem:[%s131] sm:$0x1]
    %133 = vrot.lane.b32.xlu0 %v132, 40
    %v134 = vpop.permute.xlu0 %133
    %vm135 = vcmask 359744
    %136 = vst.msk [vmem:[#allocation0] sm:$0x1] %vm135, %v134
    %s137 = scalar_lea.vmem %s0, 9
    %v138 = vld [vmem:[%s137] sm:$0x1]
    %139 = vrot.lane.b32.xlu0 %v138, 36
    %v140 = vpop.permute.xlu0 %139
    %vm141 = vcmask 326944
    %142 = vst.msk [vmem:[#allocation0] sm:$0x1] %vm141, %v140
    %s143 = scalar_lea.vmem %s0, 8
    %v144 = vld [vmem:[%s143] sm:$0x1]
    %145 = vrot.lane.b32.xlu0 %v144, 32
    %v146 = vpop.permute.xlu0 %145
    %vm147 = vcmask 294144
    %148 = vst.msk [vmem:[#allocation0] sm:$0x1] %vm147, %v146
    %s149 = scalar_lea.vmem %s0, 7
    %v150 = vld [vmem:[%s149] sm:$0x1]
    %151 = vrot.lane.b32.xlu0 %v150, 28
    %v152 = vpop.permute.xlu0 %151
    %vm153 = vcmask 261344
    %154 = vst.msk [vmem:[#allocation0] sm:$0x1] %vm153, %v152
    %s155 = scalar_lea.vmem %s0, 6
    %v156 = vld [vmem:[%s155] sm:$0x1]
    %157 = vrot.lane.b32.xlu0 %v156, 24
    %v158 = vpop.permute.xlu0 %157
    %vm159 = vcmask 228544
    %160 = vst.msk [vmem:[#allocation0] sm:$0x1] %vm159, %v158
    %s161 = scalar_lea.vmem %s0, 5
    %v162 = vld [vmem:[%s161] sm:$0x1]
    %163 = vrot.lane.b32.xlu0 %v162, 20
    %v164 = vpop.permute.xlu0 %163
    %vm165 = vcmask 195744
    %166 = vst.msk [vmem:[#allocation0] sm:$0x1] %vm165, %v164
    %s167 = scalar_lea.vmem %s0, 4
    %v168 = vld [vmem:[%s167] sm:$0x1]
    %169 = vrot.lane.b32.xlu0 %v168, 16
    %v170 = vpop.permute.xlu0 %169
    %vm171 = vcmask 162944
    %172 = vst.msk [vmem:[#allocation0] sm:$0x1] %vm171, %v170
    %s173 = scalar_lea.vmem %s0, 3
    %v174 = vld [vmem:[%s173] sm:$0x1]
    %175 = vrot.lane.b32.xlu0 %v174, 12
    %v176 = vpop.permute.xlu0 %175
    %vm177 = vcmask 130144
    %178 = vst.msk [vmem:[#allocation0] sm:$0x1] %vm177, %v176
    %s179 = scalar_lea.vmem %s0, 2
    %v180 = vld [vmem:[%s179] sm:$0x1]
    %181 = vrot.lane.b32.xlu0 %v180, 8
    %v182 = vpop.permute.xlu0 %181
    %vm183 = vcmask 97344
    %184 = vst.msk [vmem:[#allocation0] sm:$0x1] %vm183, %v182
    %s185 = scalar_lea.vmem %s0, 1
    %v186 = vld [vmem:[%s185] sm:$0x1]
    %187 = vrot.lane.b32.xlu0 %v186, 4
    %v188 = vpop.permute.xlu0 %187
    %vm189 = vcmask 64544
    %190 = vst.msk [vmem:[#allocation0] sm:$0x1] %vm189, %v188
    %s192 = sshllo.u32 0, 1
    %v194 = vld [vmem:[#allocation0] sm:%s192]
    %s195 = sshllo.u32 0, 1
    %196 = vst [vmem:[%s1] sm:%s195] %v194

// kernel: deblock_forward.3
$region0: #{deblock_forward.3}
  #allocation0 [shape = 'u32[]', space=smem, size = 0x4, offset = 0x4, fixed_abs, tag = 'smem constant byte address 0x4 - core index']
  #allocation1 [shape = 'u32[144,128]{1,0:T(1,128)}', space=vmem, size = 0x12000, scoped, tag = 'internal scratch']
  %s0 = inlined_call_operand.vmem [shape: f32[16,128], index: 0, kind: input, shape index: {}]
  %s1 = inlined_call_operand.vmem [shape: bf16[3,128,128], index: 1, kind: input, shape index: {}]
  %s2 = inlined_call_operand.vmem [shape: bf16[16,128], index: 2, kind: output, shape index: {0}]
  %s3 = inlined_call_operand.vmem [shape: f32[1,2,128], index: 3, kind: output, shape index: {1}]
  %4 = xla_tuple %s2, %s3
  %s5 = sld [smem:[#allocation0]]
  $region26: #{deblock_forward.3} parent=0
    _
  %s7 = ssub.s32 1, %s5
  %s8 = scalar_select 0, %s7, %s5
  // Predicated region
  $region2: #{deblock_forward.3} parent=0 // pred_check
    _
  $region3: #{deblock_forward.3} parent=0 // pred_check_branch
    %10 = sbr.rel (0) target = $region5
  $region4: #{deblock_forward.3} parent=0 // pred_region
    _
  $region5: #{deblock_forward.3} parent=0 // pred_fallthru
    _
  // Predicated region
  $region6: #{deblock_forward.3} parent=0 // pred_check
    _
  $region7: #{deblock_forward.3} parent=0 // pred_check_branch
    %12 = sbr.rel (0) target = $region9
  $region8: #{deblock_forward.3} parent=0 // pred_region
    _
  $region9: #{deblock_forward.3} parent=0 // pred_fallthru
    _
  %v14 = vld [vmem:[%s0] sm:$0xff]
  %v15 = vld [vmem:[%s0 + $0x8] sm:$0xff]
  %v16 = vlaneseq
  %v17 = vshrl.u32 %v16, 7
  %v18 = vadd.s32 %v17, 8
  %vm19 = vcmp.lt.s32.totalorder %v17, 0
  %v20 = vsub.s32 0, %v17
  %v21 = vsel %vm19, %v20, %v17
  %v22 = vshrl.u32 %v21, 4
  %v23 = vand.u32 %v21, 15
  %v24 = vsub.s32 0, %v23
  %v25 = vsel %vm19, %v24, %v23
  %vm26 = vcmp.lt.s32.totalorder %v18, 0
  %v27 = vsub.s32 0, %v18
  %v28 = vsel %vm26, %v27, %v18
  %v29 = vshrl.u32 %v28, 4
  %v30 = vand.u32 %v28, 15
  %v31 = vsub.s32 0, %v30
  %v32 = vsel %vm26, %v31, %v30
  %vm33 = vcmp.ne.s32.totalorder %v25, 0
  %vm34 = vcmp.ne.s32.totalorder %v32, 0
  %vm35 = vcmp.lt.s32.totalorder %v25, 0
  %vm36 = vcmp.lt.s32.totalorder %v32, 0
  %vm37 = vmand %vm35, %vm33
  %vm38 = vmand %vm36, %vm34
  %v39 = vadd.s32 %v25, 16
  %v40 = vadd.s32 %v32, 16
  %v41 = vsel %vm37, %v39, %v25
  %v42 = vsel %vm38, %v40, %v32
  %vm43 = vcmp.eq.s32.totalorder %v41, 0
  %vm44 = vcmp.eq.s32.totalorder %v42, 0
  %v45 = vrot.slane %v14, 7
  %v46 = vrot.slane %v15, 7
  %vm47 = vcmp.lt.s32.totalorder %v17, 1
  %v48 = vsel %vm47, %v45, %v46
  %v49 = vsel %vm47, %v46, %v45
  %v50 = vsel %vm43, 1, 0
  %v51 = vsel %vm44, 1, 0
  %vm52 = vcmp.eq.s32.totalorder %v50, 1
  %vm53 = vcmp.eq.s32.totalorder %v51, 1
  %v54 = vsel %vm52, 0.0, %v49
  %v55 = vsel %vm53, 0.0, %v48
  %v56 = vpack.c.bf16 %v55, %v54
  %vm57 = vcmp.eq.s32.totalorder %v41, 15
  %vm58 = vcmp.eq.s32.totalorder %v42, 15
  %v59 = vrot.slane %v14, 1
  %v60 = vrot.slane %v15, 1
  %vm61 = vcmp.lt.s32.totalorder %v17, 7
  %v62 = vsel %vm61, %v59, %v60
  %v63 = vsel %vm61, %v60, %v59
  %v64 = vsel %vm57, 1, 0
  %v65 = vsel %vm58, 1, 0
  %vm66 = vcmp.eq.s32.totalorder %v64, 1
  %vm67 = vcmp.eq.s32.totalorder %v65, 1
  %v68 = vsel %vm66, 0.0, %v62
  %v69 = vsel %vm67, 0.0, %v63
  %v70 = vpack.c.bf16 %v69, %v68
  %v71 = vpack.c.bf16 %v15, %v14
  %s72 = scalar_lea.vmem %s1, 64
  %v73 = vld [vmem:[%s72] sm:$0xf]
  %v74 = vld [vmem:[%s72 + $0x4] sm:$0xf]
  %v75 = vld [vmem:[%s72 + $0x8] sm:$0xf]
  %v76 = vld [vmem:[%s72 + $0xc] sm:$0xf]
  %v77 = vld [vmem:[%s72 + $0x10] sm:$0xf]
  %v78 = vld [vmem:[%s72 + $0x14] sm:$0xf]
  %v79 = vld [vmem:[%s72 + $0x18] sm:$0xf]
  %v80 = vld [vmem:[%s72 + $0x1c] sm:$0xf]
  %v81 = vld [vmem:[%s72 + $0x20] sm:$0xf]
  %v82 = vld [vmem:[%s72 + $0x24] sm:$0xf]
  %v83 = vld [vmem:[%s72 + $0x28] sm:$0xf]
  %v84 = vld [vmem:[%s72 + $0x2c] sm:$0xf]
  %v85 = vld [vmem:[%s72 + $0x30] sm:$0xf]
  %v86 = vld [vmem:[%s72 + $0x34] sm:$0xf]
  %v87 = vld [vmem:[%s72 + $0x38] sm:$0xf]
  %v88 = vld [vmem:[%s72 + $0x3c] sm:$0xf]
  %v89 = vld [vmem:[%s1] sm:$0xf]
  %v90 = vld [vmem:[%s1 + $0x4] sm:$0xf]
  %v91 = vld [vmem:[%s1 + $0x8] sm:$0xf]
  %v92 = vld [vmem:[%s1 + $0xc] sm:$0xf]
  %v93 = vld [vmem:[%s1 + $0x10] sm:$0xf]
  %v94 = vld [vmem:[%s1 + $0x14] sm:$0xf]
  %v95 = vld [vmem:[%s1 + $0x18] sm:$0xf]
  %v96 = vld [vmem:[%s1 + $0x1c] sm:$0xf]
  %v97 = vld [vmem:[%s1 + $0x20] sm:$0xf]
  %v98 = vld [vmem:[%s1 + $0x24] sm:$0xf]
  %v99 = vld [vmem:[%s1 + $0x28] sm:$0xf]
  %v100 = vld [vmem:[%s1 + $0x2c] sm:$0xf]
  %v101 = vld [vmem:[%s1 + $0x30] sm:$0xf]
  %v102 = vld [vmem:[%s1 + $0x34] sm:$0xf]
  %v103 = vld [vmem:[%s1 + $0x38] sm:$0xf]
  %v104 = vld [vmem:[%s1 + $0x3c] sm:$0xf]
  %v121 = vunpack.c.l.b16 %v89
  %v122 = vunpack.c.l.b16 %v90
  %v123 = vunpack.c.l.b16 %v91
  %v124 = vunpack.c.l.b16 %v92
  %v125 = vunpack.c.l.b16 %v93
  %v126 = vunpack.c.l.b16 %v94
  %v127 = vunpack.c.l.b16 %v95
  %v128 = vunpack.c.l.b16 %v96
  %v129 = vunpack.c.l.b16 %v97
  %v130 = vunpack.c.l.b16 %v98
  %v131 = vunpack.c.l.b16 %v99
  %v132 = vunpack.c.l.b16 %v100
  %v133 = vunpack.c.l.b16 %v101
  %v134 = vunpack.c.l.b16 %v102
  %v135 = vunpack.c.l.b16 %v103
  %v136 = vunpack.c.l.b16 %v104
  %v137 = vpack.c.b16 %v122, %v121
  %v138 = vpack.c.b16 %v124, %v123
  %v139 = vpack.c.b16 %v126, %v125
  %v140 = vpack.c.b16 %v128, %v127
  %v141 = vpack.c.b16 %v130, %v129
  %v142 = vpack.c.b16 %v132, %v131
  %v143 = vpack.c.b16 %v134, %v133
  %v144 = vpack.c.b16 %v136, %v135
  %153 = vmatprep.subr.bf16.mxu0 0
  %154 = vmatpush1.bf16.msra.mxu0 %v137
  %155 = vmatprep.subr.bf16.mxu0 0
  %156 = vmatpush1.bf16.msra.mxu0 %v138
  %157 = vmatprep.subr.bf16.mxu0 0
  %158 = vmatpush1.bf16.msra.mxu0 %v139
  %159 = vmatprep.subr.bf16.mxu0 0
  %160 = vmatpush1.bf16.msra.mxu0 %v140
  %161 = vmatprep.subr.bf16.mxu0 0
  %162 = vmatpush1.bf16.msra.mxu0 %v141
  %163 = vmatprep.subr.bf16.mxu0 0
  %164 = vmatpush1.bf16.msra.mxu0 %v142
  %165 = vmatprep.subr.bf16.mxu0 0
  %166 = vmatpush1.bf16.msra.mxu0 %v143
  %167 = vmatprep.subr.bf16.mxu0 0
  %168 = vmatpush1.bf16.msra.mxu0 %v144
  %169 = vmatprep.subr.bf16.mxu0 0
  %170 = vmatpush1.bf16.msra.mxu0 0
  %171 = vmatprep.subr.bf16.mxu0 0
  %172 = vmatpush1.bf16.msra.mxu0 0
  %173 = vmatprep.subr.bf16.mxu0 0
  %174 = vmatpush1.bf16.msra.mxu0 0
  %175 = vmatprep.subr.bf16.mxu0 0
  %176 = vmatpush1.bf16.msra.mxu0 0
  %177 = vmatprep.subr.bf16.mxu0 0
  %178 = vmatpush1.bf16.msra.mxu0 0
  %179 = vmatprep.subr.bf16.mxu0 0
  %180 = vmatpush1.bf16.msra.mxu0 0
  %181 = vmatprep.subr.bf16.mxu0 0
  %182 = vmatpush1.bf16.msra.mxu0 0
  %183 = vmatprep.subr.bf16.mxu0 0
  %184 = vmatpush1.bf16.msra.mxu0 0
  %185 = vmatprep.mubr.bf16.mxu0 0
  %186 = vmatmul.mubr.bf16.gmra.mrb[0].mxu0 %v56
  %v187 = vpop.f32.mrb[0].mxu0
  %v188 = vadd.f32 0.0, %v187
  %v189 = vpop.f32.mrb[0].mxu0
  %v190 = vpop.f32.mrb[0].mxu0
  %v191 = vadd.f32 0.0, %v190
  %v192 = vpop.f32.mrb[0].mxu0
  %193 = vdwg.mxu0
  %v210 = vunpack.c.l.b16 %v73
  %v211 = vunpack.c.l.b16 %v74
  %v212 = vunpack.c.l.b16 %v75
  %v213 = vunpack.c.l.b16 %v76
  %v214 = vunpack.c.l.b16 %v77
  %v215 = vunpack.c.l.b16 %v78
  %v216 = vunpack.c.l.b16 %v79
  %v217 = vunpack.c.l.b16 %v80
  %v218 = vunpack.c.l.b16 %v81
  %v219 = vunpack.c.l.b16 %v82
  %v220 = vunpack.c.l.b16 %v83
  %v221 = vunpack.c.l.b16 %v84
  %v222 = vunpack.c.l.b16 %v85
  %v223 = vunpack.c.l.b16 %v86
  %v224 = vunpack.c.l.b16 %v87
  %v225 = vunpack.c.l.b16 %v88
  %v226 = vpack.c.b16 %v211, %v210
  %v227 = vpack.c.b16 %v213, %v212
  %v228 = vpack.c.b16 %v215, %v214
  %v229 = vpack.c.b16 %v217, %v216
  %v230 = vpack.c.b16 %v219, %v218
  %v231 = vpack.c.b16 %v221, %v220
  %v232 = vpack.c.b16 %v223, %v222
  %v233 = vpack.c.b16 %v225, %v224
  %242 = vmatprep.subr.bf16.mxu0 0
  %243 = vmatpush1.bf16.msra.mxu0 %v226
  %244 = vmatprep.subr.bf16.mxu0 0
  %245 = vmatpush1.bf16.msra.mxu0 %v227
  %246 = vmatprep.subr.bf16.mxu0 0
  %247 = vmatpush1.bf16.msra.mxu0 %v228
  %248 = vmatprep.subr.bf16.mxu0 0
  %249 = vmatpush1.bf16.msra.mxu0 %v229
  %250 = vmatprep.subr.bf16.mxu0 0
  %251 = vmatpush1.bf16.msra.mxu0 %v230
  %252 = vmatprep.subr.bf16.mxu0 0
  %253 = vmatpush1.bf16.msra.mxu0 %v231
  %254 = vmatprep.subr.bf16.mxu0 0
  %255 = vmatpush1.bf16.msra.mxu0 %v232
  %256 = vmatprep.subr.bf16.mxu0 0
  %257 = vmatpush1.bf16.msra.mxu0 %v233
  %258 = vmatprep.subr.bf16.mxu0 0
  %259 = vmatpush1.bf16.msra.mxu0 0
  %260 = vmatprep.subr.bf16.mxu0 0
  %261 = vmatpush1.bf16.msra.mxu0 0
  %262 = vmatprep.subr.bf16.mxu0 0
  %263 = vmatpush1.bf16.msra.mxu0 0
  %264 = vmatprep.subr.bf16.mxu0 0
  %265 = vmatpush1.bf16.msra.mxu0 0
  %266 = vmatprep.subr.bf16.mxu0 0
  %267 = vmatpush1.bf16.msra.mxu0 0
  %268 = vmatprep.subr.bf16.mxu0 0
  %269 = vmatpush1.bf16.msra.mxu0 0
  %270 = vmatprep.subr.bf16.mxu0 0
  %271 = vmatpush1.bf16.msra.mxu0 0
  %272 = vmatprep.subr.bf16.mxu0 0
  %273 = vmatpush1.bf16.msra.mxu0 0
  %274 = vmatprep.mubr.bf16.mxu0 0
  %275 = vmatmul.mubr.bf16.gmra.mrb[0].mxu0 %v71
  %v276 = vpop.f32.mrb[0].mxu0
  %v277 = vadd.f32 %v188, %v276
  %v278 = vpop.f32.mrb[0].mxu0
  %v279 = vpop.f32.mrb[0].mxu0
  %v280 = vadd.f32 %v191, %v279
  %v281 = vpop.f32.mrb[0].mxu0
  %282 = vdwg.mxu0
  %s283 = scalar_lea.vmem %s1, 128
  %v284 = vld [vmem:[%s283] sm:$0xf]
  %v285 = vld [vmem:[%s283 + $0x4] sm:$0xf]
  %v286 = vld [vmem:[%s283 + $0x8] sm:$0xf]
  %v287 = vld [vmem:[%s283 + $0xc] sm:$0xf]
  %v288 = vld [vmem:[%s283 + $0x10] sm:$0xf]
  %v289 = vld [vmem:[%s283 + $0x14] sm:$0xf]
  %v290 = vld [vmem:[%s283 + $0x18] sm:$0xf]
  %v291 = vld [vmem:[%s283 + $0x1c] sm:$0xf]
  %v292 = vld [vmem:[%s283 + $0x20] sm:$0xf]
  %v293 = vld [vmem:[%s283 + $0x24] sm:$0xf]
  %v294 = vld [vmem:[%s283 + $0x28] sm:$0xf]
  %v295 = vld [vmem:[%s283 + $0x2c] sm:$0xf]
  %v296 = vld [vmem:[%s283 + $0x30] sm:$0xf]
  %v297 = vld [vmem:[%s283 + $0x34] sm:$0xf]
  %v298 = vld [vmem:[%s283 + $0x38] sm:$0xf]
  %v299 = vld [vmem:[%s283 + $0x3c] sm:$0xf]
  %v316 = vunpack.c.l.b16 %v284
  %v317 = vunpack.c.l.b16 %v285
  %v318 = vunpack.c.l.b16 %v286
  %v319 = vunpack.c.l.b16 %v287
  %v320 = vunpack.c.l.b16 %v288
  %v321 = vunpack.c.l.b16 %v289
  %v322 = vunpack.c.l.b16 %v290
  %v323 = vunpack.c.l.b16 %v291
  %v324 = vunpack.c.l.b16 %v292
  %v325 = vunpack.c.l.b16 %v293
  %v326 = vunpack.c.l.b16 %v294
  %v327 = vunpack.c.l.b16 %v295
  %v328 = vunpack.c.l.b16 %v296
  %v329 = vunpack.c.l.b16 %v297
  %v330 = vunpack.c.l.b16 %v298
  %v331 = vunpack.c.l.b16 %v299
  %v332 = vpack.c.b16 %v317, %v316
  %v333 = vpack.c.b16 %v319, %v318
  %v334 = vpack.c.b16 %v321, %v320
  %v335 = vpack.c.b16 %v323, %v322
  %v336 = vpack.c.b16 %v325, %v324
  %v337 = vpack.c.b16 %v327, %v326
  %v338 = vpack.c.b16 %v329, %v328
  %v339 = vpack.c.b16 %v331, %v330
  %348 = vmatprep.subr.bf16.mxu0 0
  %349 = vmatpush1.bf16.msra.mxu0 %v332
  %350 = vmatprep.subr.bf16.mxu0 0
  %351 = vmatpush1.bf16.msra.mxu0 %v333
  %352 = vmatprep.subr.bf16.mxu0 0
  %353 = vmatpush1.bf16.msra.mxu0 %v334
  %354 = vmatprep.subr.bf16.mxu0 0
  %355 = vmatpush1.bf16.msra.mxu0 %v335
  %356 = vmatprep.subr.bf16.mxu0 0
  %357 = vmatpush1.bf16.msra.mxu0 %v336
  %358 = vmatprep.subr.bf16.mxu0 0
  %359 = vmatpush1.bf16.msra.mxu0 %v337
  %360 = vmatprep.subr.bf16.mxu0 0
  %361 = vmatpush1.bf16.msra.mxu0 %v338
  %362 = vmatprep.subr.bf16.mxu0 0
  %363 = vmatpush1.bf16.msra.mxu0 %v339
  %364 = vmatprep.subr.bf16.mxu0 0
  %365 = vmatpush1.bf16.msra.mxu0 0
  %366 = vmatprep.subr.bf16.mxu0 0
  %367 = vmatpush1.bf16.msra.mxu0 0
  %368 = vmatprep.subr.bf16.mxu0 0
  %369 = vmatpush1.bf16.msra.mxu0 0
  %370 = vmatprep.subr.bf16.mxu0 0
  %371 = vmatpush1.bf16.msra.mxu0 0
  %372 = vmatprep.subr.bf16.mxu0 0
  %373 = vmatpush1.bf16.msra.mxu0 0
  %374 = vmatprep.subr.bf16.mxu0 0
  %375 = vmatpush1.bf16.msra.mxu0 0
  %376 = vmatprep.subr.bf16.mxu0 0
  %377 = vmatpush1.bf16.msra.mxu0 0
  %378 = vmatprep.subr.bf16.mxu0 0
  %379 = vmatpush1.bf16.msra.mxu0 0
  %380 = vmatprep.mubr.bf16.mxu0 0
  %381 = vmatmul.mubr.bf16.gmra.mrb[0].mxu0 %v70
  %v382 = vpop.f32.mrb[0].mxu0
  %v383 = vadd.f32 0.0, %v382
  %v384 = vpop.f32.mrb[0].mxu0
  %v385 = vpop.f32.mrb[0].mxu0
  %v386 = vadd.f32 0.0, %v385
  %v387 = vpop.f32.mrb[0].mxu0
  %388 = vdwg.mxu0
  %v389 = vadd.f32 %v277, %v383
  %v390 = vadd.f32 %v280, %v386
  %v391 = vpack.c.bf16 %v390, %v389
  %v393 = vunpack.c.l.b16 %v391
  %v394 = vunpack.c.h.b16 %v391
  %v395 = vpack.c.b16 %v393, %v393
  %v396 = vpack.c.b16 %v394, %v394
  %399 = vst [vmem:[%s2] sm:$0xf] %v395
  %400 = vst [vmem:[%s2 + $0x4] sm:$0xf] %v396
  %v401 = vadd.f32 %v389, %v390
  %v402 = vrot.slane %v401, 4
  %v403 = vadd.f32 %v401, %v402
  %v404 = vrot.slane %v403, 2
  %v405 = vadd.f32 %v403, %v404
  %v406 = vrot.slane %v405, 1
  %v407 = vadd.f32 %v405, %v406
  %v408 = vmul.f32 %v389, %v389
  %v409 = vmul.f32 %v390, %v390
  %v410 = vadd.f32 %v408, %v409
  %v411 = vrot.slane %v410, 4
  %v412 = vadd.f32 %v410, %v411
  %v413 = vrot.slane %v412, 2
  %v414 = vadd.f32 %v412, %v413
  %v415 = vrot.slane %v414, 1
  %v416 = vadd.f32 %v414, %v415
  %vm417 = vcmask 1040384
  %v418 = vsel %vm417, %v407, %v416
  %419 = vst [vmem:[%s3] sm:$0x3] %v418
  // Predicated region
  $region10: #{deblock_forward.3} parent=0 // pred_check
    _
  $region11: #{deblock_forward.3} parent=0 // pred_check_branch
    %421 = sbr.rel (0) target = $region13
  $region12: #{deblock_forward.3} parent=0 // pred_region
    _
  $region13: #{deblock_forward.3} parent=0 // pred_fallthru
    _
  // Predicated region
  $region14: #{deblock_forward.3} parent=0 // pred_check
    _
  $region15: #{deblock_forward.3} parent=0 // pred_check_branch
    %423 = sbr.rel (0) target = $region17
  $region16: #{deblock_forward.3} parent=0 // pred_region
    _
  $region17: #{deblock_forward.3} parent=0 // pred_fallthru
    _
  // Predicated region
  $region18: #{deblock_forward.3} parent=0 // pred_check
    _
  $region19: #{deblock_forward.3} parent=0 // pred_check_branch
    %425 = sbr.rel (0) target = $region21
  $region20: #{deblock_forward.3} parent=0 // pred_region
    _
  $region21: #{deblock_forward.3} parent=0 // pred_fallthru
    _
  // Predicated region
  $region22: #{deblock_forward.3} parent=0 // pred_check
    _
  $region23: #{deblock_forward.3} parent=0 // pred_check_branch
    %427 = sbr.rel (0) target = $region25
  $region24: #{deblock_forward.3} parent=0 // pred_region
    _
  $region25: #{deblock_forward.3} parent=0 // pred_fallthru
    _

// kernel: deblock_forward.5
$region0: #{deblock_forward.5}
  #allocation0 [shape = 'u32[]', space=smem, size = 0x4, offset = 0x4, fixed_abs, tag = 'smem constant byte address 0x4 - core index']
  #allocation1 [shape = 'u32[144,128]{1,0:T(1,128)}', space=vmem, size = 0x12000, scoped, tag = 'internal scratch']
  %s0 = inlined_call_operand.vmem [shape: f32[16,128], index: 0, kind: input, shape index: {}]
  %s1 = inlined_call_operand.vmem [shape: f32[16,128], index: 1, kind: input, shape index: {}, may-alias: {1,4}]
  %s2 = inlined_call_operand.vmem [shape: f32[1,128], index: 2, kind: input, shape index: {}]
  %s3 = inlined_call_operand.vmem [shape: f32[1,128], index: 3, kind: input, shape index: {}]
  %s4 = inlined_call_operand.vmem [shape: f32[16,128], index: 4, kind: output, shape index: {}, may-alias: {1,4}]
  %s5 = sld [smem:[#allocation0]]
  $region26: #{deblock_forward.5} parent=0
    _
  %s7 = ssub.s32 1, %s5
  %s8 = scalar_select 0, %s7, %s5
  // Predicated region
  $region2: #{deblock_forward.5} parent=0 // pred_check
    _
  $region3: #{deblock_forward.5} parent=0 // pred_check_branch
    %10 = sbr.rel (0) target = $region5
  $region4: #{deblock_forward.5} parent=0 // pred_region
    _
  $region5: #{deblock_forward.5} parent=0 // pred_fallthru
    _
  // Predicated region
  $region6: #{deblock_forward.5} parent=0 // pred_check
    _
  $region7: #{deblock_forward.5} parent=0 // pred_check_branch
    %12 = sbr.rel (0) target = $region9
  $region8: #{deblock_forward.5} parent=0 // pred_region
    _
  $region9: #{deblock_forward.5} parent=0 // pred_fallthru
    _
  // Predicated region
  $region10: #{deblock_forward.5} parent=0 // pred_check
    _
  $region11: #{deblock_forward.5} parent=0 // pred_check_branch
    %14 = sbr.rel (0) target = $region13
  $region12: #{deblock_forward.5} parent=0 // pred_region
    _
  $region13: #{deblock_forward.5} parent=0 // pred_fallthru
    _
  // Predicated region
  $region14: #{deblock_forward.5} parent=0 // pred_check
    _
  $region15: #{deblock_forward.5} parent=0 // pred_check_branch
    %16 = sbr.rel (0) target = $region17
  $region16: #{deblock_forward.5} parent=0 // pred_region
    _
  $region17: #{deblock_forward.5} parent=0 // pred_fallthru
    _
  %v17 = vld [vmem:[%s0] sm:$0xff]
  %v18 = vld [vmem:[%s0 + $0x8] sm:$0xff]
  %v19 = vld [vmem:[%s2] sm:$0x1]
  %v21 = vlaneseq
  %v22 = vshrl.u32 %v21, 7
  %v23 = vsub.s32 0, %v22
  %v24 = vrot.slane %v19, %v23
  %v26 = vmul.f32 %v17, %v24
  %v27 = vmul.f32 %v18, %v24
  %v28 = vld [vmem:[%s3] sm:$0x1]
  %v30 = vlaneseq
  %v31 = vshrl.u32 %v30, 7
  %v32 = vsub.s32 0, %v31
  %v33 = vrot.slane %v28, %v32
  %v35 = vadd.f32 %v26, %v33
  %v36 = vadd.f32 %v27, %v33
  %v37 = vld [vmem:[%s1] sm:$0xff]
  %v38 = vld [vmem:[%s1 + $0x8] sm:$0xff]
  %v39 = vadd.f32 %v35, %v37
  %v40 = vadd.f32 %v36, %v38
  %v41 = vmax.f32 %v39, 0.0
  %v42 = vmax.f32 %v40, 0.0
  %43 = vst [vmem:[%s4] sm:$0xff] %v41
  %44 = vst [vmem:[%s4 + $0x8] sm:$0xff] %v42
  // Predicated region
  $region18: #{deblock_forward.5} parent=0 // pred_check
    _
  $region19: #{deblock_forward.5} parent=0 // pred_check_branch
    %46 = sbr.rel (0) target = $region21
  $region20: #{deblock_forward.5} parent=0 // pred_region
    _
  $region21: #{deblock_forward.5} parent=0 // pred_fallthru
    _
  // Predicated region
  $region22: #{deblock_forward.5} parent=0 // pred_check
    _
  $region23: #{deblock_forward.5} parent=0 // pred_check_branch
    %48 = sbr.rel (0) target = $region25
  $region24: #{deblock_forward.5} parent=0 // pred_region
    _
  $region25: #{deblock_forward.5} parent=0 // pred_fallthru
    _

// kernel: deblock_forward.4
$region0: #{deblock_forward.4}
  #allocation0 [shape = 'u32[]', space=smem, size = 0x4, offset = 0x4, fixed_abs, tag = 'smem constant byte address 0x4 - core index']
  #allocation1 [shape = 'u32[144,128]{1,0:T(1,128)}', space=vmem, size = 0x12000, scoped, tag = 'internal scratch']
  %s0 = inlined_call_operand.vmem [shape: bf16[16,128], index: 0, kind: input, shape index: {}]
  %s1 = inlined_call_operand.vmem [shape: bf16[3,128,128], index: 1, kind: input, shape index: {}]
  %s2 = inlined_call_operand.vmem [shape: f32[1,128], index: 2, kind: input, shape index: {}]
  %s3 = inlined_call_operand.vmem [shape: f32[1,128], index: 3, kind: input, shape index: {}]
  %s4 = inlined_call_operand.vmem [shape: f32[16,128], index: 4, kind: output, shape index: {0}]
  %s5 = inlined_call_operand.vmem [shape: f32[1,2,128], index: 5, kind: output, shape index: {1}]
  %6 = xla_tuple %s4, %s5
  %s7 = sld [smem:[#allocation0]]
  $region34: #{deblock_forward.4} parent=0
    _
  %s9 = ssub.s32 1, %s7
  %s10 = scalar_select 0, %s9, %s7
  // Predicated region
  $region2: #{deblock_forward.4} parent=0 // pred_check
    _
  $region3: #{deblock_forward.4} parent=0 // pred_check_branch
    %12 = sbr.rel (0) target = $region5
  $region4: #{deblock_forward.4} parent=0 // pred_region
    _
  $region5: #{deblock_forward.4} parent=0 // pred_fallthru
    _
  // Predicated region
  $region6: #{deblock_forward.4} parent=0 // pred_check
    _
  $region7: #{deblock_forward.4} parent=0 // pred_check_branch
    %14 = sbr.rel (0) target = $region9
  $region8: #{deblock_forward.4} parent=0 // pred_region
    _
  $region9: #{deblock_forward.4} parent=0 // pred_fallthru
    _
  // Predicated region
  $region10: #{deblock_forward.4} parent=0 // pred_check
    _
  $region11: #{deblock_forward.4} parent=0 // pred_check_branch
    %16 = sbr.rel (0) target = $region13
  $region12: #{deblock_forward.4} parent=0 // pred_region
    _
  $region13: #{deblock_forward.4} parent=0 // pred_fallthru
    _
  // Predicated region
  $region14: #{deblock_forward.4} parent=0 // pred_check
    _
  $region15: #{deblock_forward.4} parent=0 // pred_check_branch
    %18 = sbr.rel (0) target = $region17
  $region16: #{deblock_forward.4} parent=0 // pred_region
    _
  $region17: #{deblock_forward.4} parent=0 // pred_fallthru
    _
  %v20 = vld [vmem:[%s0] sm:$0xf]
  %v21 = vld [vmem:[%s0 + $0x4] sm:$0xf]
  %v22 = vunpack.c.l.bf16 %v20
  %v23 = vunpack.c.l.bf16 %v21
  %v24 = vld [vmem:[%s2] sm:$0x1]
  %v26 = vlaneseq
  %v27 = vshrl.u32 %v26, 7
  %v28 = vsub.s32 0, %v27
  %v29 = vrot.slane %v24, %v28
  %v31 = vmul.f32 %v22, %v29
  %v32 = vmul.f32 %v23, %v29
  %v33 = vld [vmem:[%s3] sm:$0x1]
  %v35 = vlaneseq
  %v36 = vshrl.u32 %v35, 7
  %v37 = vsub.s32 0, %v36
  %v38 = vrot.slane %v33, %v37
  %v40 = vadd.f32 %v31, %v38
  %v41 = vadd.f32 %v32, %v38
  %v42 = vmax.f32 %v40, 0.0
  %v43 = vmax.f32 %v41, 0.0
  %v44 = vlaneseq
  %v45 = vshrl.u32 %v44, 7
  %v46 = vadd.s32 %v45, 8
  %vm47 = vcmp.lt.s32.totalorder %v45, 0
  %v48 = vsub.s32 0, %v45
  %v49 = vsel %vm47, %v48, %v45
  %v50 = vshrl.u32 %v49, 4
  %v51 = vand.u32 %v49, 15
  %v52 = vsub.s32 0, %v51
  %v53 = vsel %vm47, %v52, %v51
  %vm54 = vcmp.lt.s32.totalorder %v46, 0
  %v55 = vsub.s32 0, %v46
  %v56 = vsel %vm54, %v55, %v46
  %v57 = vshrl.u32 %v56, 4
  %v58 = vand.u32 %v56, 15
  %v59 = vsub.s32 0, %v58
  %v60 = vsel %vm54, %v59, %v58
  %vm61 = vcmp.ne.s32.totalorder %v53, 0
  %vm62 = vcmp.ne.s32.totalorder %v60, 0
  %vm63 = vcmp.lt.s32.totalorder %v53, 0
  %vm64 = vcmp.lt.s32.totalorder %v60, 0
  %vm65 = vmand %vm63, %vm61
  %vm66 = vmand %vm64, %vm62
  %v67 = vadd.s32 %v53, 16
  %v68 = vadd.s32 %v60, 16
  %v69 = vsel %vm65, %v67, %v53
  %v70 = vsel %vm66, %v68, %v60
  %vm71 = vcmp.eq.s32.totalorder %v69, 0
  %vm72 = vcmp.eq.s32.totalorder %v70, 0
  %v73 = vrot.slane %v42, 7
  %v74 = vrot.slane %v43, 7
  %vm75 = vcmp.lt.s32.totalorder %v45, 1
  %v76 = vsel %vm75, %v73, %v74
  %v77 = vsel %vm75, %v74, %v73
  %v78 = vsel %vm71, 1, 0
  %v79 = vsel %vm72, 1, 0
  %vm80 = vcmp.eq.s32.totalorder %v78, 1
  %vm81 = vcmp.eq.s32.totalorder %v79, 1
  %v82 = vsel %vm80, 0.0, %v77
  %v83 = vsel %vm81, 0.0, %v76
  %v84 = vpack.c.bf16 %v83, %v82
  %vm85 = vcmp.eq.s32.totalorder %v69, 15
  %vm86 = vcmp.eq.s32.totalorder %v70, 15
  %v87 = vrot.slane %v42, 1
  %v88 = vrot.slane %v43, 1
  %vm89 = vcmp.lt.s32.totalorder %v45, 7
  %v90 = vsel %vm89, %v87, %v88
  %v91 = vsel %vm89, %v88, %v87
  %v92 = vsel %vm85, 1, 0
  %v93 = vsel %vm86, 1, 0
  %vm94 = vcmp.eq.s32.totalorder %v92, 1
  %vm95 = vcmp.eq.s32.totalorder %v93, 1
  %v96 = vsel %vm94, 0.0, %v90
  %v97 = vsel %vm95, 0.0, %v91
  %v98 = vpack.c.bf16 %v97, %v96
  %v99 = vpack.c.bf16 %v43, %v42
  %s100 = scalar_lea.vmem %s1, 64
  %v101 = vld [vmem:[%s100] sm:$0xf]
  %v102 = vld [vmem:[%s100 + $0x4] sm:$0xf]
  %v103 = vld [vmem:[%s100 + $0x8] sm:$0xf]
  %v104 = vld [vmem:[%s100 + $0xc] sm:$0xf]
  %v105 = vld [vmem:[%s100 + $0x10] sm:$0xf]
  %v106 = vld [vmem:[%s100 + $0x14] sm:$0xf]
  %v107 = vld [vmem:[%s100 + $0x18] sm:$0xf]
  %v108 = vld [vmem:[%s100 + $0x1c] sm:$0xf]
  %v109 = vld [vmem:[%s100 + $0x20] sm:$0xf]
  %v110 = vld [vmem:[%s100 + $0x24] sm:$0xf]
  %v111 = vld [vmem:[%s100 + $0x28] sm:$0xf]
  %v112 = vld [vmem:[%s100 + $0x2c] sm:$0xf]
  %v113 = vld [vmem:[%s100 + $0x30] sm:$0xf]
  %v114 = vld [vmem:[%s100 + $0x34] sm:$0xf]
  %v115 = vld [vmem:[%s100 + $0x38] sm:$0xf]
  %v116 = vld [vmem:[%s100 + $0x3c] sm:$0xf]
  %v117 = vld [vmem:[%s1] sm:$0xf]
  %v118 = vld [vmem:[%s1 + $0x4] sm:$0xf]
  %v119 = vld [vmem:[%s1 + $0x8] sm:$0xf]
  %v120 = vld [vmem:[%s1 + $0xc] sm:$0xf]
  %v121 = vld [vmem:[%s1 + $0x10] sm:$0xf]
  %v122 = vld [vmem:[%s1 + $0x14] sm:$0xf]
  %v123 = vld [vmem:[%s1 + $0x18] sm:$0xf]
  %v124 = vld [vmem:[%s1 + $0x1c] sm:$0xf]
  %v125 = vld [vmem:[%s1 + $0x20] sm:$0xf]
  %v126 = vld [vmem:[%s1 + $0x24] sm:$0xf]
  %v127 = vld [vmem:[%s1 + $0x28] sm:$0xf]
  %v128 = vld [vmem:[%s1 + $0x2c] sm:$0xf]
  %v129 = vld [vmem:[%s1 + $0x30] sm:$0xf]
  %v130 = vld [vmem:[%s1 + $0x34] sm:$0xf]
  %v131 = vld [vmem:[%s1 + $0x38] sm:$0xf]
  %v132 = vld [vmem:[%s1 + $0x3c] sm:$0xf]
  %v149 = vunpack.c.l.b16 %v117
  %v150 = vunpack.c.l.b16 %v118
  %v151 = vunpack.c.l.b16 %v119
  %v152 = vunpack.c.l.b16 %v120
  %v153 = vunpack.c.l.b16 %v121
  %v154 = vunpack.c.l.b16 %v122
  %v155 = vunpack.c.l.b16 %v123
  %v156 = vunpack.c.l.b16 %v124
  %v157 = vunpack.c.l.b16 %v125
  %v158 = vunpack.c.l.b16 %v126
  %v159 = vunpack.c.l.b16 %v127
  %v160 = vunpack.c.l.b16 %v128
  %v161 = vunpack.c.l.b16 %v129
  %v162 = vunpack.c.l.b16 %v130
  %v163 = vunpack.c.l.b16 %v131
  %v164 = vunpack.c.l.b16 %v132
  %v165 = vpack.c.b16 %v150, %v149
  %v166 = vpack.c.b16 %v152, %v151
  %v167 = vpack.c.b16 %v154, %v153
  %v168 = vpack.c.b16 %v156, %v155
  %v169 = vpack.c.b16 %v158, %v157
  %v170 = vpack.c.b16 %v160, %v159
  %v171 = vpack.c.b16 %v162, %v161
  %v172 = vpack.c.b16 %v164, %v163
  %181 = vmatprep.subr.bf16.mxu0 0
  %182 = vmatpush1.bf16.msra.mxu0 %v165
  %183 = vmatprep.subr.bf16.mxu0 0
  %184 = vmatpush1.bf16.msra.mxu0 %v166
  %185 = vmatprep.subr.bf16.mxu0 0
  %186 = vmatpush1.bf16.msra.mxu0 %v167
  %187 = vmatprep.subr.bf16.mxu0 0
  %188 = vmatpush1.bf16.msra.mxu0 %v168
  %189 = vmatprep.subr.bf16.mxu0 0
  %190 = vmatpush1.bf16.msra.mxu0 %v169
  %191 = vmatprep.subr.bf16.mxu0 0
  %192 = vmatpush1.bf16.msra.mxu0 %v170
  %193 = vmatprep.subr.bf16.mxu0 0
  %194 = vmatpush1.bf16.msra.mxu0 %v171
  %195 = vmatprep.subr.bf16.mxu0 0
  %196 = vmatpush1.bf16.msra.mxu0 %v172
  %197 = vmatprep.subr.bf16.mxu0 0
  %198 = vmatpush1.bf16.msra.mxu0 0
  %199 = vmatprep.subr.bf16.mxu0 0
  %200 = vmatpush1.bf16.msra.mxu0 0
  %201 = vmatprep.subr.bf16.mxu0 0
  %202 = vmatpush1.bf16.msra.mxu0 0
  %203 = vmatprep.subr.bf16.mxu0 0
  %204 = vmatpush1.bf16.msra.mxu0 0
  %205 = vmatprep.subr.bf16.mxu0 0
  %206 = vmatpush1.bf16.msra.mxu0 0
  %207 = vmatprep.subr.bf16.mxu0 0
  %208 = vmatpush1.bf16.msra.mxu0 0
  %209 = vmatprep.subr.bf16.mxu0 0
  %210 = vmatpush1.bf16.msra.mxu0 0
  %211 = vmatprep.subr.bf16.mxu0 0
  %212 = vmatpush1.bf16.msra.mxu0 0
  %213 = vmatprep.mubr.bf16.mxu0 0
  %214 = vmatmul.mubr.bf16.gmra.mrb[0].mxu0 %v84
  %v215 = vpop.f32.mrb[0].mxu0
  %v216 = vadd.f32 0.0, %v215
  %v217 = vpop.f32.mrb[0].mxu0
  %v218 = vpop.f32.mrb[0].mxu0
  %v219 = vadd.f32 0.0, %v218
  %v220 = vpop.f32.mrb[0].mxu0
  %221 = vdwg.mxu0
  %v238 = vunpack.c.l.b16 %v101
  %v239 = vunpack.c.l.b16 %v102
  %v240 = vunpack.c.l.b16 %v103
  %v241 = vunpack.c.l.b16 %v104
  %v242 = vunpack.c.l.b16 %v105
  %v243 = vunpack.c.l.b16 %v106
  %v244 = vunpack.c.l.b16 %v107
  %v245 = vunpack.c.l.b16 %v108
  %v246 = vunpack.c.l.b16 %v109
  %v247 = vunpack.c.l.b16 %v110
  %v248 = vunpack.c.l.b16 %v111
  %v249 = vunpack.c.l.b16 %v112
  %v250 = vunpack.c.l.b16 %v113
  %v251 = vunpack.c.l.b16 %v114
  %v252 = vunpack.c.l.b16 %v115
  %v253 = vunpack.c.l.b16 %v116
  %v254 = vpack.c.b16 %v239, %v238
  %v255 = vpack.c.b16 %v241, %v240
  %v256 = vpack.c.b16 %v243, %v242
  %v257 = vpack.c.b16 %v245, %v244
  %v258 = vpack.c.b16 %v247, %v246
  %v259 = vpack.c.b16 %v249, %v248
  %v260 = vpack.c.b16 %v251, %v250
  %v261 = vpack.c.b16 %v253, %v252
  %270 = vmatprep.subr.bf16.mxu0 0
  %271 = vmatpush1.bf16.msra.mxu0 %v254
  %272 = vmatprep.subr.bf16.mxu0 0
  %273 = vmatpush1.bf16.msra.mxu0 %v255
  %274 = vmatprep.subr.bf16.mxu0 0
  %275 = vmatpush1.bf16.msra.mxu0 %v256
  %276 = vmatprep.subr.bf16.mxu0 0
  %277 = vmatpush1.bf16.msra.mxu0 %v257
  %278 = vmatprep.subr.bf16.mxu0 0
  %279 = vmatpush1.bf16.msra.mxu0 %v258
  %280 = vmatprep.subr.bf16.mxu0 0
  %281 = vmatpush1.bf16.msra.mxu0 %v259
  %282 = vmatprep.subr.bf16.mxu0 0
  %283 = vmatpush1.bf16.msra.mxu0 %v260
  %284 = vmatprep.subr.bf16.mxu0 0
  %285 = vmatpush1.bf16.msra.mxu0 %v261
  %286 = vmatprep.subr.bf16.mxu0 0
  %287 = vmatpush1.bf16.msra.mxu0 0
  %288 = vmatprep.subr.bf16.mxu0 0
  %289 = vmatpush1.bf16.msra.mxu0 0
  %290 = vmatprep.subr.bf16.mxu0 0
  %291 = vmatpush1.bf16.msra.mxu0 0
  %292 = vmatprep.subr.bf16.mxu0 0
  %293 = vmatpush1.bf16.msra.mxu0 0
  %294 = vmatprep.subr.bf16.mxu0 0
  %295 = vmatpush1.bf16.msra.mxu0 0
  %296 = vmatprep.subr.bf16.mxu0 0
  %297 = vmatpush1.bf16.msra.mxu0 0
  %298 = vmatprep.subr.bf16.mxu0 0
  %299 = vmatpush1.bf16.msra.mxu0 0
  %300 = vmatprep.subr.bf16.mxu0 0
  %301 = vmatpush1.bf16.msra.mxu0 0
  %302 = vmatprep.mubr.bf16.mxu0 0
  %303 = vmatmul.mubr.bf16.gmra.mrb[0].mxu0 %v99
  %v304 = vpop.f32.mrb[0].mxu0
  %v305 = vadd.f32 %v216, %v304
  %v306 = vpop.f32.mrb[0].mxu0
  %v307 = vpop.f32.mrb[0].mxu0
  %v308 = vadd.f32 %v219, %v307
  %v309 = vpop.f32.mrb[0].mxu0
  %310 = vdwg.mxu0
  %s311 = scalar_lea.vmem %s1, 128
  %v312 = vld [vmem:[%s311] sm:$0xf]
  %v313 = vld [vmem:[%s311 + $0x4] sm:$0xf]
  %v314 = vld [vmem:[%s311 + $0x8] sm:$0xf]
  %v315 = vld [vmem:[%s311 + $0xc] sm:$0xf]
  %v316 = vld [vmem:[%s311 + $0x10] sm:$0xf]
  %v317 = vld [vmem:[%s311 + $0x14] sm:$0xf]
  %v318 = vld [vmem:[%s311 + $0x18] sm:$0xf]
  %v319 = vld [vmem:[%s311 + $0x1c] sm:$0xf]
  %v320 = vld [vmem:[%s311 + $0x20] sm:$0xf]
  %v321 = vld [vmem:[%s311 + $0x24] sm:$0xf]
  %v322 = vld [vmem:[%s311 + $0x28] sm:$0xf]
  %v323 = vld [vmem:[%s311 + $0x2c] sm:$0xf]
  %v324 = vld [vmem:[%s311 + $0x30] sm:$0xf]
  %v325 = vld [vmem:[%s311 + $0x34] sm:$0xf]
  %v326 = vld [vmem:[%s311 + $0x38] sm:$0xf]
  %v327 = vld [vmem:[%s311 + $0x3c] sm:$0xf]
  %v344 = vunpack.c.l.b16 %v312
  %v345 = vunpack.c.l.b16 %v313
  %v346 = vunpack.c.l.b16 %v314
  %v347 = vunpack.c.l.b16 %v315
  %v348 = vunpack.c.l.b16 %v316
  %v349 = vunpack.c.l.b16 %v317
  %v350 = vunpack.c.l.b16 %v318
  %v351 = vunpack.c.l.b16 %v319
  %v352 = vunpack.c.l.b16 %v320
  %v353 = vunpack.c.l.b16 %v321
  %v354 = vunpack.c.l.b16 %v322
  %v355 = vunpack.c.l.b16 %v323
  %v356 = vunpack.c.l.b16 %v324
  %v357 = vunpack.c.l.b16 %v325
  %v358 = vunpack.c.l.b16 %v326
  %v359 = vunpack.c.l.b16 %v327
  %v360 = vpack.c.b16 %v345, %v344
  %v361 = vpack.c.b16 %v347, %v346
  %v362 = vpack.c.b16 %v349, %v348
  %v363 = vpack.c.b16 %v351, %v350
  %v364 = vpack.c.b16 %v353, %v352
  %v365 = vpack.c.b16 %v355, %v354
  %v366 = vpack.c.b16 %v357, %v356
  %v367 = vpack.c.b16 %v359, %v358
  %376 = vmatprep.subr.bf16.mxu0 0
  %377 = vmatpush1.bf16.msra.mxu0 %v360
  %378 = vmatprep.subr.bf16.mxu0 0
  %379 = vmatpush1.bf16.msra.mxu0 %v361
  %380 = vmatprep.subr.bf16.mxu0 0
  %381 = vmatpush1.bf16.msra.mxu0 %v362
  %382 = vmatprep.subr.bf16.mxu0 0
  %383 = vmatpush1.bf16.msra.mxu0 %v363
  %384 = vmatprep.subr.bf16.mxu0 0
  %385 = vmatpush1.bf16.msra.mxu0 %v364
  %386 = vmatprep.subr.bf16.mxu0 0
  %387 = vmatpush1.bf16.msra.mxu0 %v365
  %388 = vmatprep.subr.bf16.mxu0 0
  %389 = vmatpush1.bf16.msra.mxu0 %v366
  %390 = vmatprep.subr.bf16.mxu0 0
  %391 = vmatpush1.bf16.msra.mxu0 %v367
  %392 = vmatprep.subr.bf16.mxu0 0
  %393 = vmatpush1.bf16.msra.mxu0 0
  %394 = vmatprep.subr.bf16.mxu0 0
  %395 = vmatpush1.bf16.msra.mxu0 0
  %396 = vmatprep.subr.bf16.mxu0 0
  %397 = vmatpush1.bf16.msra.mxu0 0
  %398 = vmatprep.subr.bf16.mxu0 0
  %399 = vmatpush1.bf16.msra.mxu0 0
  %400 = vmatprep.subr.bf16.mxu0 0
  %401 = vmatpush1.bf16.msra.mxu0 0
  %402 = vmatprep.subr.bf16.mxu0 0
  %403 = vmatpush1.bf16.msra.mxu0 0
  %404 = vmatprep.subr.bf16.mxu0 0
  %405 = vmatpush1.bf16.msra.mxu0 0
  %406 = vmatprep.subr.bf16.mxu0 0
  %407 = vmatpush1.bf16.msra.mxu0 0
  %408 = vmatprep.mubr.bf16.mxu0 0
  %409 = vmatmul.mubr.bf16.gmra.mrb[0].mxu0 %v98
  %v410 = vpop.f32.mrb[0].mxu0
  %v411 = vadd.f32 0.0, %v410
  %v412 = vpop.f32.mrb[0].mxu0
  %v413 = vpop.f32.mrb[0].mxu0
  %v414 = vadd.f32 0.0, %v413
  %v415 = vpop.f32.mrb[0].mxu0
  %416 = vdwg.mxu0
  %v417 = vadd.f32 %v305, %v411
  %v418 = vadd.f32 %v308, %v414
  %419 = vst [vmem:[%s4] sm:$0xff] %v417
  %420 = vst [vmem:[%s4 + $0x8] sm:$0xff] %v418
  %v421 = vadd.f32 %v417, %v418
  %v422 = vrot.slane %v421, 4
  %v423 = vadd.f32 %v421, %v422
  %v424 = vrot.slane %v423, 2
  %v425 = vadd.f32 %v423, %v424
  %v426 = vrot.slane %v425, 1
  %v427 = vadd.f32 %v425, %v426
  %v428 = vmul.f32 %v417, %v417
  %v429 = vmul.f32 %v418, %v418
  %v430 = vadd.f32 %v428, %v429
  %v431 = vrot.slane %v430, 4
  %v432 = vadd.f32 %v430, %v431
  %v433 = vrot.slane %v432, 2
  %v434 = vadd.f32 %v432, %v433
  %v435 = vrot.slane %v434, 1
  %v436 = vadd.f32 %v434, %v435
  %vm437 = vcmask 1040384
  %v438 = vsel %vm437, %v427, %v436
  %439 = vst [vmem:[%s5] sm:$0x3] %v438
  // Predicated region
  $region18: #{deblock_forward.4} parent=0 // pred_check
    _
  $region19: #{deblock_forward.4} parent=0 // pred_check_branch
    %441 = sbr.rel (0) target = $region21
  $region20: #{deblock_forward.4} parent=0 // pred_region
    _
  $region21: #{deblock_forward.4} parent=0 // pred_fallthru
    _
  // Predicated region
  $region22: #{deblock_forward.4} parent=0 // pred_check
    _
  $region23: #{deblock_forward.4} parent=0 // pred_check_branch
    %443 = sbr.rel (0) target = $region25
  $region24: #{deblock_forward.4} parent=0 // pred_region
    _
  $region25: #{deblock_forward.4} parent=0 // pred_fallthru
    _
  // Predicated region
  $region26: #{deblock_forward.4} parent=0 // pred_check
    _
  $region27: #{deblock_forward.4} parent=0 // pred_check_branch
    %445 = sbr.rel (0) target = $region29
  $region28: #{deblock_forward.4} parent=0 // pred_region
    _
  $region29: #{deblock_forward.4} parent=0 // pred_fallthru
    _
  // Predicated region
  $region30: #{deblock_forward.4} parent=0 // pred_check
    _
  $region31: #{deblock_forward.4} parent=0 // pred_check_branch
    %447 = sbr.rel (0) target = $region33
  $region32: #{deblock_forward.4} parent=0 // pred_region
    _
  $region33: #{deblock_forward.4} parent=0 // pred_fallthru
    _

</llo_original>
